<compile_context>
chip_gen: v7x
topology: tpu7x:2x2x1
jax: 0.10.0
libtpu: 0.0.40
codegen_flags: <defaults>
</compile_context>

<pallas_src>
import jax
import jax.numpy as jnp
from jax import lax
from jax.experimental import pallas as pl
from jax.experimental.pallas import tpu as pltpu


def _attention_kernel(x_ref, m_ref, b_ref, wv_ref, bv_ref, o_ref,
                      mx_ref, v_ref, jterm_ref):
    # x_ref   : (1, C, N)  channel-major feature map (f32), resident per batch
    # m_ref   : (C, C)     M = Wq^T Wk                (bf16)
    # b_ref   : (8, C)     row 0 = Wk^T bq, rows 1..7 zero (bf16, MXU-padded row)
    # wv_ref  : (C, C)     value conv weight          (bf16)
    # bv_ref  : (C, 1)     value conv bias            (f32)
    # o_ref   : (1, C, Tq) output tile, channel-major (token axis lane-dense)
    # scratch : mx_ref (C, N) bf16, v_ref (C, N) bf16, jterm_ref (1, N) f32
    q = pl.program_id(1)
    tq = o_ref.shape[2]

    # ---- hoisted per-batch work: key/value projections + key-side bias term ----
    @pl.when(q == 0)
    def _():
        xb = x_ref[0].astype(jnp.bfloat16)                               # (C, N)
        mx_ref[...] = jnp.dot(m_ref[...], xb,
                              preferred_element_type=jnp.float32).astype(jnp.bfloat16)
        v_ref[...] = jnp.dot(wv_ref[...], xb,
                             preferred_element_type=jnp.float32).astype(jnp.bfloat16)
        jt = jnp.dot(b_ref[...], xb, preferred_element_type=jnp.float32)  # (8, N)
        jterm_ref[...] = jt[0:1, :]                                       # (1, N)

    # ---- per-query-tile work ----
    # Query tile = lane-aligned slice of the resident block (also the residual).
    start = pl.multiple_of(q * tq, tq)
    x_tile = x_ref[0, :, pl.ds(start, tq)]                                # (C, Tq) f32
    xq = jnp.transpose(x_tile, (1, 0)).astype(jnp.bfloat16)               # (Tq, C) small XLU transpose

    # energy[i, j] = x_i^T M x_j + (Wk^T bq) . x_j
    # (the x_i^T Wq^T bk and bq.bk terms are constant along j and cancel in softmax)
    energy = jnp.dot(xq, mx_ref[...], preferred_element_type=jnp.float32)  # (Tq, N)
    energy = energy + jterm_ref[...]

    # softmax over keys (lane axis); reciprocal goes to the otherwise-idle EUP.
    e = jnp.exp(energy - jnp.max(energy, axis=-1, keepdims=True))
    attn = (e * pl.reciprocal(jnp.sum(e, axis=-1, keepdims=True), approx=True)
            ).astype(jnp.bfloat16)                                        # (Tq, N)

    # out[c, i] = sum_j v[c, j] * attn[i, j]  -> contract last axes (MXU-native),
    # result comes out channel-major with the token axis lane-dense.
    out = lax.dot_general(v_ref[...], attn, (((1,), (1,)), ((), ())),
                          preferred_element_type=jnp.float32)              # (C, Tq)

    # value bias (softmax rows sum to 1) + residual, both in f32.
    o_ref[0] = (out + bv_ref[...] + x_tile).astype(o_ref.dtype)


def _estimate_vmem_bytes(C, N, tq):
    """Rough upper bound on the kernel's resident VMEM working set."""
    x_block = 2 * C * N * 4                        # (1,C,N) f32 input, double-buffered
    weights = 2 * (2 * C * C * 2 + 8 * C * 2 + C * 4)   # M, Wv (bf16) + b row + bv
    scratch = 2 * C * N * 2 + N * 4                # mx, v (bf16) + jterm (f32)
    out_block = 2 * C * tq * 4                     # (1,C,Tq) f32 output, double-buffered
    softmax = 3 * tq * N * 4 + tq * N * 2          # energy / exp / attn temporaries
    query = tq * C * 10                            # query slice + transpose + bf16 copy
    return x_block + weights + scratch + out_block + softmax + query


def attention_module(x_nchw, wq, bq, wk, bk, wv, bv, *, tile_q=None):
    """x_nchw: (B, C, H, W) f32; wq/wk: (C//8, C); wv: (C, C). Returns (B, C, H, W)."""
    B, C, H, W = x_nchw.shape
    N = H * W
    x_cn = x_nchw.reshape(B, C, N).astype(jnp.float32)

    # Fold the two narrow (C/8-wide) 1x1 convs into one dense CxC matrix plus the
    # single bias term that survives the softmax.
    m_qk = jnp.dot(wq.T, wk).astype(jnp.bfloat16)                          # (C, C)
    b_vec = jnp.dot(wk.T, bq)                                              # (C,) = Wk^T bq
    b_pad = jnp.zeros((8, C), jnp.float32).at[0].set(b_vec).astype(jnp.bfloat16)
    wv_b = wv.astype(jnp.bfloat16)
    bv_col = bv.reshape(C, 1).astype(jnp.float32)

    # VMEM-aware tile and limit selection (v5e/v6e: 128 MiB, v7x: 64 MiB).
    try:
        vmem_cap = int(pltpu.get_tpu_info().vmem_capacity_bytes)
    except Exception:
        vmem_cap = 64 * 1024 * 1024                                        # conservative fallback
    budget = int(0.65 * vmem_cap)

    if tile_q is None:
        candidates = [N] + [t for t in (1024, 512, 256, 128) if t < N and N % t == 0]
        tile_q = candidates[-1]
        for t in candidates:                       # largest query tile that fits VMEM
            if _estimate_vmem_bytes(C, N, t) <= budget:
                tile_q = t
                break
    assert N % tile_q == 0, "tile_q must divide H*W"
    grid = (B, N // tile_q)

    vmem_limit = int(min(budget, max(32 * 1024 * 1024,
                                     (5 * _estimate_vmem_bytes(C, N, tile_q)) // 4)))

    out_cn = pl.pallas_call(
        _attention_kernel,
        out_shape=jax.ShapeDtypeStruct((B, C, N), x_nchw.dtype),
        grid_spec=pltpu.PrefetchScalarGridSpec(
            num_scalar_prefetch=0,
            grid=grid,
            in_specs=[
                pl.BlockSpec((1, C, N), lambda b, q: (b, 0, 0)),   # x, resident per batch
                pl.BlockSpec((C, C), lambda b, q: (0, 0)),         # Wq^T Wk (bf16)
                pl.BlockSpec((8, C), lambda b, q: (0, 0)),         # Wk^T bq row (bf16)
                pl.BlockSpec((C, C), lambda b, q: (0, 0)),         # Wv (bf16)
                pl.BlockSpec((C, 1), lambda b, q: (0, 0)),         # bv (f32)
            ],
            out_specs=pl.BlockSpec((1, C, tile_q), lambda b, q: (b, 0, q)),
            scratch_shapes=[
                pltpu.VMEM((C, N), jnp.bfloat16),                  # mx = (Wq^T Wk) x
                pltpu.VMEM((C, N), jnp.bfloat16),                  # v  = Wv x
                pltpu.VMEM((1, N), jnp.float32),                   # (Wk^T bq) . x
            ],
        ),
        compiler_params=pltpu.CompilerParams(
            # q axis must be "arbitrary": the q == 0 scratch init assumes one
            # core sweeps all query tiles of a batch; batch axis is parallel.
            dimension_semantics=("parallel", "arbitrary"),
            vmem_limit_bytes=vmem_limit,
        ),
    )(x_cn, m_qk, b_pad, wv_b, bv_col)

    return out_cn.reshape(B, C, H, W)


def _reference(x_nchw, wq, bq, wk, bk, wv, bv):
    """Plain-JAX reference mirroring the PyTorch forward exactly (f32)."""
    B, C, H, W = x_nchw.shape
    N = H * W
    xf = x_nchw.reshape(B, C, N)
    q = jnp.einsum("oc,bcn->bon", wq, xf) + bq[None, :, None]
    k = jnp.einsum("oc,bcn->bon", wk, xf) + bk[None, :, None]
    v = jnp.einsum("oc,bcn->bon", wv, xf) + bv[None, :, None]
    energy = jnp.einsum("bci,bcj->bij", q, k)
    attn = jax.nn.softmax(energy, axis=-1)
    out = jnp.einsum("bcj,bij->bci", v, attn)
    return out.reshape(B, C, H, W) + x_nchw


def _make_params(key, C):
    C8 = max(C // 8, 1)
    k1, k2, k3, k4, k5, k6 = jax.random.split(key, 6)
    wq = 0.1 * jax.random.normal(k1, (C8, C), dtype=jnp.float32)
    bq = 0.1 * jax.random.normal(k2, (C8,), dtype=jnp.float32)
    wk = 0.1 * jax.random.normal(k3, (C8, C), dtype=jnp.float32)
    bk = 0.1 * jax.random.normal(k4, (C8,), dtype=jnp.float32)
    wv = 0.1 * jax.random.normal(k5, (C, C), dtype=jnp.float32)
    bv = 0.1 * jax.random.normal(k6, (C,), dtype=jnp.float32)
    return wq, bq, wk, bk, wv, bv


def _run_case(seed, B, C, H, W, tile_q=None, tol=3e-2):
    key = jax.random.PRNGKey(seed)
    kx, kp = jax.random.split(key)
    x = jax.random.normal(kx, (B, C, H, W), dtype=jnp.float32)
    wq, bq, wk, bk, wv, bv = _make_params(kp, C)

    out = attention_module(x, wq, bq, wk, bk, wv, bv, tile_q=tile_q)
    out = jax.block_until_ready(out)
    ref = _reference(x, wq, bq, wk, bk, wv, bv)

    assert out.shape == x.shape
    # Tolerance accounts for bf16 MXU operands and the EUP approximate reciprocal.
    assert jnp.allclose(out, ref, atol=tol, rtol=tol), (
        f"mismatch vs reference (B={B}, C={C}, H={H}, W={W}, tile_q={tile_q}), "
        f"max abs diff={float(jnp.max(jnp.abs(out - ref)))}")


if __name__ == "__main__":
    # Lane-dense path: N = 16*16 = 256 (multiple of 128), single query tile.
    _run_case(seed=0, B=2, C=32, H=16, W=16)
    # Explicit smaller query tile -> exercises the (B, N/Tq) grid, the
    # q == 0 scratch caching and the in-kernel residual/query slicing.
    _run_case(seed=0, B=2, C=32, H=16, W=16, tile_q=128)
    # Different channel count, single 128-token tile.
    _run_case(seed=1, B=1, C=64, H=8, W=16)

    print("KERNEL_OK")
</pallas_src>

<mosaic_0001>
module attributes {stable_mosaic.version = 11 : i64} {
  func.func @_attention_kernel(%arg0: i32, %arg1: i32, %arg2: memref<1x32x256xf32, #tpu.memory_space<vmem>>, %arg3: memref<32x32xbf16, #tpu.memory_space<vmem>>, %arg4: memref<8x32xbf16, #tpu.memory_space<vmem>>, %arg5: memref<32x32xbf16, #tpu.memory_space<vmem>>, %arg6: memref<32x1xf32, #tpu.memory_space<vmem>>, %arg7: memref<1x32x256xf32, #tpu.memory_space<vmem>>, %arg8: memref<32x256xbf16, #tpu.memory_space<vmem>>, %arg9: memref<32x256xbf16, #tpu.memory_space<vmem>>, %arg10: memref<1x256xf32, #tpu.memory_space<vmem>>) attributes {dimension_semantics = [#tpu.dimension_semantics<parallel>, #tpu.dimension_semantics<arbitrary>], iteration_bounds = array<i64: 2, 1>, scalar_prefetch = 0 : i64, scratch_operands = 3 : i64, tpu.core_type = #tpu.core_type<tc>, window_params = [{transform_indices = @transform_0, window_bounds = array<i64: 1, 32, 256>}, {pipeline_mode = #tpu.pipeline_mode<synchronous>, transform_indices = @transform_1, window_bounds = array<i64: 32, 32>}, {pipeline_mode = #tpu.pipeline_mode<synchronous>, transform_indices = @transform_2, window_bounds = array<i64: 8, 32>}, {pipeline_mode = #tpu.pipeline_mode<synchronous>, transform_indices = @transform_3, window_bounds = array<i64: 32, 32>}, {pipeline_mode = #tpu.pipeline_mode<synchronous>, transform_indices = @transform_4, window_bounds = array<i64: 32, 1>}, {transform_indices = @transform_5, window_bounds = array<i64: 1, 32, 256>}]} {
    %c0_i32 = arith.constant 0 : i32
    %0 = arith.cmpi eq, %arg1, %c0_i32 : i32
    %1 = arith.extui %0 : i1 to i32
    %c0_i32_0 = arith.constant 0 : i32
    %2 = arith.cmpi ne, %1, %c0_i32_0 : i32
    scf.if %2 {
      %c0_16 = arith.constant 0 : index
      %c0_17 = arith.constant 0 : index
      %c0_18 = arith.constant 0 : index
      %35 = vector.load %arg2[%c0_16, %c0_17, %c0_18] : memref<1x32x256xf32, #tpu.memory_space<vmem>>, vector<1x32x256xf32>
      %36 = vector.shape_cast %35 : vector<1x32x256xf32> to vector<32x256xf32>
      %37 = arith.truncf %36 : vector<32x256xf32> to vector<32x256xbf16>
      %c0_19 = arith.constant 0 : index
      %c0_20 = arith.constant 0 : index
      %38 = vector.load %arg3[%c0_19, %c0_20] : memref<32x32xbf16, #tpu.memory_space<vmem>>, vector<32x32xbf16>
      %cst_21 = arith.constant dense<0.000000e+00> : vector<32x256xf32>
      %39 = tpu.matmul %38, %37, %cst_21 {dimension_numbers = #tpu.dot_dimension_numbers<[1], [0], [0], [1], [0, 0, 1, 1], [], []>} : vector<32x32xbf16>, vector<32x256xbf16>, vector<32x256xf32> -> vector<32x256xf32>
      %40 = arith.truncf %39 : vector<32x256xf32> to vector<32x256xbf16>
      %c0_22 = arith.constant 0 : index
      %c0_23 = arith.constant 0 : index
      %41 = vector.load %arg8[%c0_22, %c0_23] : memref<32x256xbf16, #tpu.memory_space<vmem>>, vector<32x256xbf16>
      tpu.vector_store %arg8[%c0_22, %c0_23], %40 {strides = array<i32>} : memref<32x256xbf16, #tpu.memory_space<vmem>>, vector<32x256xbf16>,
      %c0_24 = arith.constant 0 : index
      %c0_25 = arith.constant 0 : index
      %42 = vector.load %arg5[%c0_24, %c0_25] : memref<32x32xbf16, #tpu.memory_space<vmem>>, vector<32x32xbf16>
      %cst_26 = arith.constant dense<0.000000e+00> : vector<32x256xf32>
      %43 = tpu.matmul %42, %37, %cst_26 {dimension_numbers = #tpu.dot_dimension_numbers<[1], [0], [0], [1], [0, 0, 1, 1], [], []>} : vector<32x32xbf16>, vector<32x256xbf16>, vector<32x256xf32> -> vector<32x256xf32>
      %44 = arith.truncf %43 : vector<32x256xf32> to vector<32x256xbf16>
      %c0_27 = arith.constant 0 : index
      %c0_28 = arith.constant 0 : index
      %45 = vector.load %arg9[%c0_27, %c0_28] : memref<32x256xbf16, #tpu.memory_space<vmem>>, vector<32x256xbf16>
      tpu.vector_store %arg9[%c0_27, %c0_28], %44 {strides = array<i32>} : memref<32x256xbf16, #tpu.memory_space<vmem>>, vector<32x256xbf16>,
      %c0_29 = arith.constant 0 : index
      %c0_30 = arith.constant 0 : index
      %46 = vector.load %arg4[%c0_29, %c0_30] : memref<8x32xbf16, #tpu.memory_space<vmem>>, vector<8x32xbf16>
      %cst_31 = arith.constant dense<0.000000e+00> : vector<8x256xf32>
      %47 = tpu.matmul %46, %37, %cst_31 {dimension_numbers = #tpu.dot_dimension_numbers<[1], [0], [0], [1], [0, 0, 1, 1], [], []>} : vector<8x32xbf16>, vector<32x256xbf16>, vector<8x256xf32> -> vector<8x256xf32>
      %48 = vector.extract_strided_slice %47 {offsets = [0, 0], sizes = [1, 256], strides = [1, 1]} : vector<8x256xf32> to vector<1x256xf32>
      %c0_32 = arith.constant 0 : index
      %c0_33 = arith.constant 0 : index
      %49 = vector.load %arg10[%c0_32, %c0_33] : memref<1x256xf32, #tpu.memory_space<vmem>>, vector<1x256xf32>
      tpu.vector_store %arg10[%c0_32, %c0_33], %48 {strides = array<i32>} : memref<1x256xf32, #tpu.memory_space<vmem>>, vector<1x256xf32>,
    } else {
    }
    %c256_i32 = arith.constant 256 : i32
    %3 = arith.muli %arg1, %c256_i32 : i32
    %4 = tpu.assume_multiple %3, 256 : i32
    %c0 = arith.constant 0 : index
    %c0_1 = arith.constant 0 : index
    %5 = arith.index_cast %4 : i32 to index
    %6 = vector.load %arg2[%c0, %c0_1, %5] : memref<1x32x256xf32, #tpu.memory_space<vmem>>, vector<1x32x256xf32>
    %7 = vector.shape_cast %6 : vector<1x32x256xf32> to vector<32x256xf32>
    %8 = tpu.transpose %7, [1, 0] : vector<32x256xf32> -> vector<256x32xf32>
    %9 = arith.truncf %8 : vector<256x32xf32> to vector<256x32xbf16>
    %c0_2 = arith.constant 0 : index
    %c0_3 = arith.constant 0 : index
    %10 = vector.load %arg8[%c0_2, %c0_3] : memref<32x256xbf16, #tpu.memory_space<vmem>>, vector<32x256xbf16>
    %cst = arith.constant dense<0.000000e+00> : vector<256x256xf32>
    %11 = tpu.matmul %9, %10, %cst {dimension_numbers = #tpu.dot_dimension_numbers<[1], [0], [0], [1], [0, 0, 1, 1], [], []>} : vector<256x32xbf16>, vector<32x256xbf16>, vector<256x256xf32> -> vector<256x256xf32>
    %c0_4 = arith.constant 0 : index
    %c0_5 = arith.constant 0 : index
    %12 = vector.load %arg10[%c0_4, %c0_5] : memref<1x256xf32, #tpu.memory_space<vmem>>, vector<1x256xf32>
    %13 = vector.broadcast %12 : vector<1x256xf32> to vector<256x256xf32>
    %14 = arith.addf %11, %13 : vector<256x256xf32>
    %cst_6 = arith.constant dense<0xFF800000> : vector<256xf32>
    %15 = vector.multi_reduction <maximumf>, %14, %cst_6 [1] : vector<256x256xf32> to vector<256xf32>
    %16 = vector.shape_cast %15 : vector<256xf32> to vector<256x1xf32>
    %17 = vector.broadcast %16 : vector<256x1xf32> to vector<256x256xf32>
    %18 = arith.subf %14, %17 : vector<256x256xf32>
    %19 = math.exp %18 : vector<256x256xf32>
    %cst_7 = arith.constant dense<0.000000e+00> : vector<256xf32>
    %20 = vector.multi_reduction <add>, %19, %cst_7 [1] : vector<256x256xf32> to vector<256xf32>
    %21 = vector.shape_cast %20 : vector<256xf32> to vector<256x1xf32>
    %22 = tpu.reciprocal %21 {approx = true} : vector<256x1xf32> -> vector<256x1xf32>
    %23 = vector.broadcast %22 : vector<256x1xf32> to vector<256x256xf32>
    %24 = arith.mulf %19, %23 : vector<256x256xf32>
    %25 = arith.truncf %24 : vector<256x256xf32> to vector<256x256xbf16>
    %c0_8 = arith.constant 0 : index
    %c0_9 = arith.constant 0 : index
    %26 = vector.load %arg9[%c0_8, %c0_9] : memref<32x256xbf16, #tpu.memory_space<vmem>>, vector<32x256xbf16>
    %cst_10 = arith.constant dense<0.000000e+00> : vector<32x256xf32>
    %27 = tpu.matmul %26, %25, %cst_10 {dimension_numbers = #tpu.dot_dimension_numbers<[1], [1], [0], [0], [0, 0, 1, 0], [], []>} : vector<32x256xbf16>, vector<256x256xbf16>, vector<32x256xf32> -> vector<32x256xf32>
    %c0_11 = arith.constant 0 : index
    %c0_12 = arith.constant 0 : index
    %28 = vector.load %arg6[%c0_11, %c0_12] : memref<32x1xf32, #tpu.memory_space<vmem>>, vector<32x1xf32>
    %29 = vector.broadcast %28 : vector<32x1xf32> to vector<32x256xf32>
    %30 = arith.addf %27, %29 : vector<32x256xf32>
    %31 = arith.addf %30, %7 : vector<32x256xf32>
    %c0_13 = arith.constant 0 : index
    %c0_14 = arith.constant 0 : index
    %c0_15 = arith.constant 0 : index
    %32 = vector.load %arg7[%c0_13, %c0_14, %c0_15] : memref<1x32x256xf32, #tpu.memory_space<vmem>>, vector<1x32x256xf32>
    %33 = vector.shape_cast %32 : vector<1x32x256xf32> to vector<32x256xf32>
    %34 = vector.shape_cast %31 : vector<32x256xf32> to vector<1x32x256xf32>
    tpu.vector_store %arg7[%c0_13, %c0_14, %c0_15], %34 {strides = array<i32>} : memref<1x32x256xf32, #tpu.memory_space<vmem>>, vector<1x32x256xf32>,
    return
  }
  func.func @transform_0(%arg0: i32, %arg1: i32) -> (i32, i32, i32) {
    %c0_i32 = arith.constant 0 : i32
    %c0_i32_0 = arith.constant 0 : i32
    %c0_i32_1 = arith.constant 0 : i32
    return %arg0, %c0_i32, %c0_i32_0 : i32, i32, i32
  }
  func.func @transform_1(%arg0: i32, %arg1: i32) -> (i32, i32) {
    %c0_i32 = arith.constant 0 : i32
    %c0_i32_0 = arith.constant 0 : i32
    %c0_i32_1 = arith.constant 0 : i32
    return %c0_i32, %c0_i32_0 : i32, i32
  }
  func.func @transform_2(%arg0: i32, %arg1: i32) -> (i32, i32) {
    %c0_i32 = arith.constant 0 : i32
    %c0_i32_0 = arith.constant 0 : i32
    %c0_i32_1 = arith.constant 0 : i32
    return %c0_i32, %c0_i32_0 : i32, i32
  }
  func.func @transform_3(%arg0: i32, %arg1: i32) -> (i32, i32) {
    %c0_i32 = arith.constant 0 : i32
    %c0_i32_0 = arith.constant 0 : i32
    %c0_i32_1 = arith.constant 0 : i32
    return %c0_i32, %c0_i32_0 : i32, i32
  }
  func.func @transform_4(%arg0: i32, %arg1: i32) -> (i32, i32) {
    %c0_i32 = arith.constant 0 : i32
    %c0_i32_0 = arith.constant 0 : i32
    %c0_i32_1 = arith.constant 0 : i32
    return %c0_i32, %c0_i32_0 : i32, i32
  }
  func.func @transform_5(%arg0: i32, %arg1: i32) -> (i32, i32, i32) {
    %c0_i32 = arith.constant 0 : i32
    %c0_i32_0 = arith.constant 0 : i32
    return %arg0, %c0_i32, %arg1 : i32, i32, i32
  }
}

</mosaic_0001>

<llo_original>
// kernel: tpu_custom_call.1
$region0: #{tpu_custom_call.1}
  #allocation0 [shape = 'u32[]', space=smem, size = 0x4, offset = 0x4, fixed_abs, tag = 'smem constant byte address 0x4 - core index']
  #allocation1 [shape = 'u32[144,128]{1,0:T(1,128)}', space=vmem, size = 0x12000, scoped, tag = 'internal scratch']
  #allocation2 [shape = 'bf16[32,256]{1,0:T(16,128)(2,1)}', space=vmem, size = 0x4000, scoped, tag = 'scratch operand']
  #allocation3 [shape = 'bf16[32,256]{1,0:T(16,128)(2,1)}', space=vmem, size = 0x4000, scoped, tag = 'scratch operand']
  #allocation4 [shape = 'f32[1,256]{1,0:T(1,128)}', space=vmem, size = 0x400, scoped, tag = 'scratch operand']
  %s0 = inlined_call_operand.hbm [shape: f32[2,32,256], index: 0, kind: input, shape index: {}]
  %s1 = inlined_call_operand.vmem [shape: bf16[32,32], index: 1, kind: input, shape index: {}]
  %s2 = inlined_call_operand.vmem [shape: bf16[8,32], index: 2, kind: input, shape index: {}]
  %s3 = inlined_call_operand.vmem [shape: bf16[32,32], index: 3, kind: input, shape index: {}]
  %s4 = inlined_call_operand.vmem [shape: f32[32,1], index: 4, kind: input, shape index: {}]
  %s5 = inlined_call_operand.hbm [shape: f32[2,32,256], index: 5, kind: output, shape index: {}]
  %s6 = sld [smem:[#allocation0]]
  $region61: #{tpu_custom_call.1} parent=0
    _
  %s8 = ssub.s32 1, %s6
  %s9 = scalar_select 0, %s8, %s6
  $region1: #{tpu_custom_call.1} parent=0
    #allocation5 [shape = 'u8[65536]{0}', space=vmem, size = 0x10000, scoped, tag = 'input window, operand 0']
    #allocation6 [shape = 's32[2]{0}', space=sflag, size = 0x8, scoped, tag = 'scoped memory for tpu_custom_call.1']
    #allocation7 [shape = 's32[2]{0}', space=sflag, size = 0x8, scoped, tag = 'scoped memory for tpu_custom_call.1']
    #allocation8 [shape = 'u8[65536]{0}', space=vmem, size = 0x10000, scoped, tag = 'output window, operand 0']
    %10 = vsyncpa [#allocation6], 0
    %s11 = scalar_lea.sflag [#allocation6], 1
    %12 = vsyncpa %s11, 0
    %13 = vsyncpa [#allocation7], 0
    %s14 = scalar_lea.sflag [#allocation7], 1
    %15 = vsyncpa %s14, 0
    loop: start=0, step=1, limit=4
    $region2: #{tpu_custom_call.1} parent=1 // loop_pre_header
      _
    $region3: #{tpu_custom_call.1} parent=1 // loop_header
      %s17 = sphi 0, %s21
      %p18 = scmp.ge.s32.totalorder %s17, 4
      %s24 = sphi 0, %s36
      %s25 = sphi 0, %s32
      %s26 = sphi 0, %s24
      %s27 = sphi 0, %s25
      %s28 = sphi 0, %s26
      %s29 = sphi 0, %s27
      %s39 = sphi 0, %s41
      %s42 = sphi 0, %s39
      %s43 = sphi 0, %s42
      %s59 = sphi 0, %s43
      %s63 = sphi 0, %s63
      %s65 = sphi 0, %s63
      %s66 = sphi 0, %s65
      %s80 = sphi 0, %s66
      %s84 = sphi 0, %s84
      %s86 = sphi 0, %s84
      %s87 = sphi 0, %s86
      %s101 = sphi 0, %s87
      %s105 = sphi 0, %s105
      %s107 = sphi 0, %s105
      %s108 = sphi 0, %s107
      %s122 = sphi 0, %s108
      %s126 = sphi 0, %s126
      %s128 = sphi 0, %s126
      %s129 = sphi 0, %s128
      %s143 = sphi 0, %s129
      %s151 = sphi 0, %s153
      %s154 = sphi 0, %s151
      %s155 = sphi 0, %s154
      %s171 = sphi 0, %s155
    $region4: #{tpu_custom_call.1} parent=1 // loop_header_branch
      %20 = sbr.rel (%p18) target = $region8
    $region5: #{tpu_custom_call.1} parent=1 // loop_body
      %s22 = ssub.s32 %s17, 1
      %s23 = ssub.s32 %s17, 2
      %s30 = sadd.s32 1, %s25
      %p31 = scmp.ge.s32.totalorder %s30, 1
      %s32 = scalar_select %p31, 0, %s30
      %s33 = sadd.s32 1, %s24
      %s34 = scalar_select %p31, %s33, %s24
      %p35 = scmp.ge.s32.totalorder %s34, 2
      %s36 = scalar_select %p35, 0, %s34
      %s37 = ssub.s32 %s24, %s36
      %p38 = scmp.eq.s32.totalorder %s37, 0
      %s40 = sadd.s32 %s39, 1
      %s41 = scalar_select %p38, %s39, %s40
      %p44 = pneg %p38
      %p45 = scmp.eq.s32.totalorder %s17, 1
      %p46 = por %p44, %p45
      %p47 = scmp.ne.s32.totalorder %s39, %s42
      %p48 = scmp.eq.s32.totalorder %s17, 0
      %p49 = por %p47, %p48
      %p50 = scmp.ne.s32.totalorder %s39, %s42
      %p51 = scmp.eq.s32.totalorder %s22, 1
      %p52 = por %p50, %p51
      %p53 = scmp.ne.s32.totalorder %s42, %s43
      %p54 = scmp.eq.s32.totalorder %s22, 0
      %p55 = por %p53, %p54
      %p56 = scmp.ne.s32.totalorder %s42, %s43
      %p57 = scmp.eq.s32.totalorder %s23, 1
      %p58 = por %p56, %p57
      %p60 = scmp.ne.s32.totalorder %s43, %s59
      %p61 = scmp.eq.s32.totalorder %s23, 0
      %p62 = por %p60, %p61
      %s64 = sadd.s32 %s63, 1
      %p67 = scmp.eq.s32.totalorder %s17, 1
      %p68 = scmp.ne.s32.totalorder %s63, %s65
      %p69 = scmp.eq.s32.totalorder %s17, 0
      %p70 = por %p68, %p69
      %p71 = scmp.ne.s32.totalorder %s63, %s65
      %p72 = scmp.eq.s32.totalorder %s22, 1
      %p73 = por %p71, %p72
      %p74 = scmp.ne.s32.totalorder %s65, %s66
      %p75 = scmp.eq.s32.totalorder %s22, 0
      %p76 = por %p74, %p75
      %p77 = scmp.ne.s32.totalorder %s65, %s66
      %p78 = scmp.eq.s32.totalorder %s23, 1
      %p79 = por %p77, %p78
      %p81 = scmp.ne.s32.totalorder %s66, %s80
      %p82 = scmp.eq.s32.totalorder %s23, 0
      %p83 = por %p81, %p82
      %s85 = sadd.s32 %s84, 1
      %p88 = scmp.eq.s32.totalorder %s17, 1
      %p89 = scmp.ne.s32.totalorder %s84, %s86
      %p90 = scmp.eq.s32.totalorder %s17, 0
      %p91 = por %p89, %p90
      %p92 = scmp.ne.s32.totalorder %s84, %s86
      %p93 = scmp.eq.s32.totalorder %s22, 1
      %p94 = por %p92, %p93
      %p95 = scmp.ne.s32.totalorder %s86, %s87
      %p96 = scmp.eq.s32.totalorder %s22, 0
      %p97 = por %p95, %p96
      %p98 = scmp.ne.s32.totalorder %s86, %s87
      %p99 = scmp.eq.s32.totalorder %s23, 1
      %p100 = por %p98, %p99
      %p102 = scmp.ne.s32.totalorder %s87, %s101
      %p103 = scmp.eq.s32.totalorder %s23, 0
      %p104 = por %p102, %p103
      %s106 = sadd.s32 %s105, 1
      %p109 = scmp.eq.s32.totalorder %s17, 1
      %p110 = scmp.ne.s32.totalorder %s105, %s107
      %p111 = scmp.eq.s32.totalorder %s17, 0
      %p112 = por %p110, %p111
      %p113 = scmp.ne.s32.totalorder %s105, %s107
      %p114 = scmp.eq.s32.totalorder %s22, 1
      %p115 = por %p113, %p114
      %p116 = scmp.ne.s32.totalorder %s107, %s108
      %p117 = scmp.eq.s32.totalorder %s22, 0
      %p118 = por %p116, %p117
      %p119 = scmp.ne.s32.totalorder %s107, %s108
      %p120 = scmp.eq.s32.totalorder %s23, 1
      %p121 = por %p119, %p120
      %p123 = scmp.ne.s32.totalorder %s108, %s122
      %p124 = scmp.eq.s32.totalorder %s23, 0
      %p125 = por %p123, %p124
      %s127 = sadd.s32 %s126, 1
      %p130 = scmp.eq.s32.totalorder %s17, 1
      %p131 = scmp.ne.s32.totalorder %s126, %s128
      %p132 = scmp.eq.s32.totalorder %s17, 0
      %p133 = por %p131, %p132
      %p134 = scmp.ne.s32.totalorder %s126, %s128
      %p135 = scmp.eq.s32.totalorder %s22, 1
      %p136 = por %p134, %p135
      %p137 = scmp.ne.s32.totalorder %s128, %s129
      %p138 = scmp.eq.s32.totalorder %s22, 0
      %p139 = por %p137, %p138
      %p140 = scmp.ne.s32.totalorder %s128, %s129
      %p141 = scmp.eq.s32.totalorder %s23, 1
      %p142 = por %p140, %p141
      %p144 = scmp.ne.s32.totalorder %s129, %s143
      %p145 = scmp.eq.s32.totalorder %s23, 0
      %p146 = por %p144, %p145
      %s147 = ssub.s32 %s24, %s36
      %s148 = ssub.s32 %s25, %s32
      %s149 = sor.u32 %s147, %s148
      %p150 = scmp.eq.s32.totalorder %s149, 0
      %s152 = sadd.s32 %s151, 1
      %s153 = scalar_select %p150, %s151, %s152
      %p156 = pneg %p150
      %p157 = scmp.eq.s32.totalorder %s17, 1
      %p158 = por %p156, %p157
      %p159 = scmp.ne.s32.totalorder %s151, %s154
      %p160 = scmp.eq.s32.totalorder %s17, 0
      %p161 = por %p159, %p160
      %p162 = scmp.ne.s32.totalorder %s151, %s154
      %p163 = scmp.eq.s32.totalorder %s22, 1
      %p164 = por %p162, %p163
      %p165 = scmp.ne.s32.totalorder %s154, %s155
      %p166 = scmp.eq.s32.totalorder %s22, 0
      %p167 = por %p165, %p166
      %p168 = scmp.ne.s32.totalorder %s154, %s155
      %p169 = scmp.eq.s32.totalorder %s23, 1
      %p170 = por %p168, %p169
      %p172 = scmp.ne.s32.totalorder %s155, %s171
      %p173 = scmp.eq.s32.totalorder %s23, 0
      %p174 = por %p172, %p173
      %p175 = scmp.le.s32.totalorder 1, %s17
      %p176 = scmp.lt.s32.totalorder %s17, 3
      %p177 = pnand %p175, %p176
      %p178 = pneg %p177
      // Predicated region
      $region9: #{tpu_custom_call.1} parent=5 // pred_check
        _
      $region10: #{tpu_custom_call.1} parent=5 // pred_check_branch
        %180 = sbr.rel (%p177) target = $region12
      $region11: #{tpu_custom_call.1} parent=5 // pred_region
        %s181 = ssub.s32 %s17, 1
        // Predicated region
        $region13: #{tpu_custom_call.1} parent=11 // pred_check
          %p182 = pneg %p76
        $region14: #{tpu_custom_call.1} parent=11 // pred_check_branch
          %184 = sbr.rel (%p182) target = $region16
        $region15: #{tpu_custom_call.1} parent=11 // pred_region
          _
        $region16: #{tpu_custom_call.1} parent=11 // pred_fallthru
          _
        // Predicated region
        $region17: #{tpu_custom_call.1} parent=11 // pred_check
          %p185 = pneg %p97
        $region18: #{tpu_custom_call.1} parent=11 // pred_check_branch
          %187 = sbr.rel (%p185) target = $region20
        $region19: #{tpu_custom_call.1} parent=11 // pred_region
          _
        $region20: #{tpu_custom_call.1} parent=11 // pred_fallthru
          _
        // Predicated region
        $region21: #{tpu_custom_call.1} parent=11 // pred_check
          %p188 = pneg %p118
        $region22: #{tpu_custom_call.1} parent=11 // pred_check_branch
          %190 = sbr.rel (%p188) target = $region24
        $region23: #{tpu_custom_call.1} parent=11 // pred_region
          _
        $region24: #{tpu_custom_call.1} parent=11 // pred_fallthru
          _
        // Predicated region
        $region25: #{tpu_custom_call.1} parent=11 // pred_check
          %p191 = pneg %p139
        $region26: #{tpu_custom_call.1} parent=11 // pred_check_branch
          %193 = sbr.rel (%p191) target = $region28
        $region27: #{tpu_custom_call.1} parent=11 // pred_region
          _
        $region28: #{tpu_custom_call.1} parent=11 // pred_fallthru
          _
      $region12: #{tpu_custom_call.1} parent=5 // pred_fallthru
        _
      %p194 = scmp.lt.s32.totalorder %s17, 2
      // Predicated region
      $region29: #{tpu_custom_call.1} parent=5 // pred_check
        %p195 = pneg %p194
      $region30: #{tpu_custom_call.1} parent=5 // pred_check_branch
        %197 = sbr.rel (%p195) target = $region32
      $region31: #{tpu_custom_call.1} parent=5 // pred_region
        // Predicated region
        $region33: #{tpu_custom_call.1} parent=31 // pred_check
          %p198 = pneg %p49
        $region34: #{tpu_custom_call.1} parent=31 // pred_check_branch
          %200 = sbr.rel (%p198) target = $region36
        $region35: #{tpu_custom_call.1} parent=31 // pred_region
          %s201 = sand.u32 %s39, 1
          %s202 = scalar_lea.sflag [#allocation6], %s201
          %s203 = sand.u32 %s39, 1
          %s204 = smul.addr %s203, 64
          %s205 = scalar_lea.vmem [#allocation5], %s204
          %s207 = ssub.s32 1024, 1024
          %208 = vsyncadd %s202, %s207
          %s209 = smul.addr %s24, 8
          %s210 = smul.addr %s209, 128
          %s211 = scalar_lea.hbm %s0, %s210
          %s212 = sshll.u32 %s205, 4
          %s213 = int_to_ptr.vmem [resolvable:$true] %s212
          %218 = dma.hbm_to_vmem [thread:$0]  %s211, 1024, %s213, %s202, 256, 256, 16
        $region36: #{tpu_custom_call.1} parent=31 // pred_fallthru
          _
      $region32: #{tpu_custom_call.1} parent=5 // pred_fallthru
        _
      %p219 = scmp.le.s32.totalorder 1, %s17
      %p220 = scmp.lt.s32.totalorder %s17, 3
      %p221 = pnand %p219, %p220
      %p222 = pneg %p221
      // Predicated region
      $region37: #{tpu_custom_call.1} parent=5 // pred_check
        _
      $region38: #{tpu_custom_call.1} parent=5 // pred_check_branch
        %224 = sbr.rel (%p221) target = $region40
      $region39: #{tpu_custom_call.1} parent=5 // pred_region
        %s225 = ssub.s32 %s17, 1
        %s226 = sand.u32 %s42, 1
        %s227 = scalar_lea.sflag [#allocation6], %s226
        %s228 = sand.u32 %s42, 1
        %s229 = smul.addr %s228, 64
        %s230 = scalar_lea.vmem [#allocation5], %s229
        // Predicated region
        $region41: #{tpu_custom_call.1} parent=39 // pred_check
          %p231 = pneg %p55
        $region42: #{tpu_custom_call.1} parent=39 // pred_check_branch
          %233 = sbr.rel (%p231) target = $region44
        $region43: #{tpu_custom_call.1} parent=39 // pred_region
          %234 = dma.done %s227, 1024
        $region44: #{tpu_custom_call.1} parent=39 // pred_fallthru
          _
        %s235 = sand.u32 %s42, 1
        %s236 = scalar_lea.sflag [#allocation6], %s235
        %s237 = sand.u32 %s42, 1
        %s238 = smul.addr %s237, 64
        %s239 = scalar_lea.vmem [#allocation5], %s238
        %p240 = pneg %p55
        %p241 = pneg %p52
        %p242 = pneg %p76
        %p243 = pneg %p73
        %p244 = pneg %p97
        %p245 = pneg %p94
        %p246 = pneg %p118
        %p247 = pneg %p115
        %p248 = pneg %p139
        %p249 = pneg %p136
        %p250 = pneg %p167
        %p251 = pneg %p164
        %s252 = sand.u32 %s154, 1
        %s253 = scalar_lea.sflag [#allocation7], %s252
        %s254 = sand.u32 %s154, 1
        %s255 = smul.addr %s254, 64
        %s256 = scalar_lea.vmem [#allocation8], %s255
        %s257 = smul.u32 2, %s27
        %p259 = scmp.eq.s32.totalorder %s27, 0
        // Predicated region
        $region45: #{tpu_custom_call.1} parent=39 // pred_check
          %p260 = pneg %p259
        $region46: #{tpu_custom_call.1} parent=39 // pred_check_branch
          %262 = sbr.rel (%p260) target = $region48
        $region47: #{tpu_custom_call.1} parent=39 // pred_region
          %v263 = vld [vmem:[%s230] sm:$0xff]
          %v264 = vld [vmem:[%s230 + $0x8] sm:$0xff]
          %v265 = vld [vmem:[%s230 + $0x10] sm:$0xff]
          %v266 = vld [vmem:[%s230 + $0x18] sm:$0xff]
          %v267 = vld [vmem:[%s230 + $0x20] sm:$0xff]
          %v268 = vld [vmem:[%s230 + $0x28] sm:$0xff]
          %v269 = vld [vmem:[%s230 + $0x30] sm:$0xff]
          %v270 = vld [vmem:[%s230 + $0x38] sm:$0xff]
          %v271 = vpack.c.bf16 %v265, %v263
          %v272 = vpack.c.bf16 %v266, %v264
          %v273 = vpack.c.bf16 %v269, %v267
          %v274 = vpack.c.bf16 %v270, %v268
          %v275 = vld [vmem:[%s1] sm:$0xf]
          %v276 = vld [vmem:[%s1 + $0x4] sm:$0xf]
          %v277 = vld [vmem:[%s1 + $0x8] sm:$0xf]
          %v278 = vld [vmem:[%s1 + $0xc] sm:$0xf]
          %v283 = vunpack.c.l.b16 %v275
          %v284 = vunpack.c.l.b16 %v276
          %v285 = vunpack.c.l.b16 %v277
          %v286 = vunpack.c.l.b16 %v278
          %v287 = vpack.c.b16 %v284, %v283
          %v288 = vpack.c.b16 %v286, %v285
          %vm289 = vcmask 261120
          %v291 = vsel %vm289, %v287, 0
          %v294 = vsel %vm289, %v288, 0
          %296 = vmatprep.subr.bf16.mxu0 %v272
          %297 = vmatpush1.bf16.msra.mxu0 %v271
          %298 = vmatprep.subr.bf16.mxu0 %v274
          %299 = vmatpush1.bf16.msra.mxu0 %v273
          %300 = vmatprep.subr.bf16.mxu0 0
          %301 = vmatpush1.bf16.msra.mxu0 0
          %302 = vmatprep.subr.bf16.mxu0 0
          %303 = vmatpush1.bf16.msra.mxu0 0
          %304 = vmatprep.subr.bf16.mxu0 0
          %305 = vmatpush1.bf16.msra.mxu0 0
          %306 = vmatprep.subr.bf16.mxu0 0
          %307 = vmatpush1.bf16.msra.mxu0 0
          %308 = vmatprep.subr.bf16.mxu0 0
          %309 = vmatpush1.bf16.msra.mxu0 0
          %310 = vmatprep.subr.bf16.mxu0 0
          %311 = vmatpush1.bf16.msra.mxu0 0
          %312 = vmatprep.subr.bf16.mxu0 0
          %313 = vmatpush1.bf16.msra.mxu0 0
          %314 = vmatprep.subr.bf16.mxu0 0
          %315 = vmatpush1.bf16.msra.mxu0 0
          %316 = vmatprep.subr.bf16.mxu0 0
          %317 = vmatpush1.bf16.msra.mxu0 0
          %318 = vmatprep.subr.bf16.mxu0 0
          %319 = vmatpush1.bf16.msra.mxu0 0
          %320 = vmatprep.subr.bf16.mxu0 0
          %321 = vmatpush1.bf16.msra.mxu0 0
          %322 = vmatprep.subr.bf16.mxu0 0
          %323 = vmatpush1.bf16.msra.mxu0 0
          %324 = vmatprep.subr.bf16.mxu0 0
          %325 = vmatpush1.bf16.msra.mxu0 0
          %326 = vmatprep.subr.bf16.mxu0 0
          %327 = vmatpush1.bf16.msra.mxu0 0
          %328 = vmatprep.mubr.bf16.mxu0 0
          %329 = vmatmul.mubr.bf16.gmra.mrb[0].mxu0 %v291
          %v330 = vpop.f32.mrb[0].mxu0
          %v331 = vadd.f32 0.0, %v330
          %v332 = vpop.f32.mrb[0].mxu0
          %v333 = vadd.f32 0.0, %v332
          %v334 = vpop.f32.mrb[0].mxu0
          %v335 = vadd.f32 0.0, %v334
          %v336 = vpop.f32.mrb[0].mxu0
          %v337 = vadd.f32 0.0, %v336
          %338 = vmatprep.mubr.bf16.mxu0 0
          %339 = vmatmul.mubr.bf16.gmra.mrb[0].mxu0 %v294
          %v340 = vpop.f32.mrb[0].mxu0
          %v341 = vadd.f32 0.0, %v340
          %v342 = vpop.f32.mrb[0].mxu0
          %v343 = vadd.f32 0.0, %v342
          %v344 = vpop.f32.mrb[0].mxu0
          %v345 = vadd.f32 0.0, %v344
          %v346 = vpop.f32.mrb[0].mxu0
          %v347 = vadd.f32 0.0, %v346
          %348 = vdwg.mxu0
          %v349 = vpack.c.bf16 %v335, %v331
          %v350 = vpack.c.bf16 %v337, %v333
          %v351 = vpack.c.bf16 %v345, %v341
          %v352 = vpack.c.bf16 %v347, %v343
          %353 = vst [vmem:[#allocation2] sm:$0xff] %v349
          %354 = vst [vmem:[#allocation2 + $0x8] sm:$0xff] %v350
          %355 = vst [vmem:[#allocation2 + $0x10] sm:$0xff] %v351
          %356 = vst [vmem:[#allocation2 + $0x18] sm:$0xff] %v352
          %v357 = vld [vmem:[%s3] sm:$0xf]
          %v358 = vld [vmem:[%s3 + $0x4] sm:$0xf]
          %v359 = vld [vmem:[%s3 + $0x8] sm:$0xf]
          %v360 = vld [vmem:[%s3 + $0xc] sm:$0xf]
          %v365 = vunpack.c.l.b16 %v357
          %v366 = vunpack.c.l.b16 %v358
          %v367 = vunpack.c.l.b16 %v359
          %v368 = vunpack.c.l.b16 %v360
          %v369 = vpack.c.b16 %v366, %v365
          %v370 = vpack.c.b16 %v368, %v367
          %v372 = vsel %vm289, %v369, 0
          %v375 = vsel %vm289, %v370, 0
          %377 = vmatprep.subr.bf16.mxu0 %v272
          %378 = vmatpush1.bf16.msra.mxu0 %v271
          %379 = vmatprep.subr.bf16.mxu0 %v274
          %380 = vmatpush1.bf16.msra.mxu0 %v273
          %381 = vmatprep.subr.bf16.mxu0 0
          %382 = vmatpush1.bf16.msra.mxu0 0
          %383 = vmatprep.subr.bf16.mxu0 0
          %384 = vmatpush1.bf16.msra.mxu0 0
          %385 = vmatprep.subr.bf16.mxu0 0
          %386 = vmatpush1.bf16.msra.mxu0 0
          %387 = vmatprep.subr.bf16.mxu0 0
          %388 = vmatpush1.bf16.msra.mxu0 0
          %389 = vmatprep.subr.bf16.mxu0 0
          %390 = vmatpush1.bf16.msra.mxu0 0
          %391 = vmatprep.subr.bf16.mxu0 0
          %392 = vmatpush1.bf16.msra.mxu0 0
          %393 = vmatprep.subr.bf16.mxu0 0
          %394 = vmatpush1.bf16.msra.mxu0 0
          %395 = vmatprep.subr.bf16.mxu0 0
          %396 = vmatpush1.bf16.msra.mxu0 0
          %397 = vmatprep.subr.bf16.mxu0 0
          %398 = vmatpush1.bf16.msra.mxu0 0
          %399 = vmatprep.subr.bf16.mxu0 0
          %400 = vmatpush1.bf16.msra.mxu0 0
          %401 = vmatprep.subr.bf16.mxu0 0
          %402 = vmatpush1.bf16.msra.mxu0 0
          %403 = vmatprep.subr.bf16.mxu0 0
          %404 = vmatpush1.bf16.msra.mxu0 0
          %405 = vmatprep.subr.bf16.mxu0 0
          %406 = vmatpush1.bf16.msra.mxu0 0
          %407 = vmatprep.subr.bf16.mxu0 0
          %408 = vmatpush1.bf16.msra.mxu0 0
          %409 = vmatprep.mubr.bf16.mxu0 0
          %410 = vmatmul.mubr.bf16.gmra.mrb[0].mxu0 %v372
          %v411 = vpop.f32.mrb[0].mxu0
          %v412 = vadd.f32 0.0, %v411
          %v413 = vpop.f32.mrb[0].mxu0
          %v414 = vadd.f32 0.0, %v413
          %v415 = vpop.f32.mrb[0].mxu0
          %v416 = vadd.f32 0.0, %v415
          %v417 = vpop.f32.mrb[0].mxu0
          %v418 = vadd.f32 0.0, %v417
          %419 = vmatprep.mubr.bf16.mxu0 0
          %420 = vmatmul.mubr.bf16.gmra.mrb[0].mxu0 %v375
          %v421 = vpop.f32.mrb[0].mxu0
          %v422 = vadd.f32 0.0, %v421
          %v423 = vpop.f32.mrb[0].mxu0
          %v424 = vadd.f32 0.0, %v423
          %v425 = vpop.f32.mrb[0].mxu0
          %v426 = vadd.f32 0.0, %v425
          %v427 = vpop.f32.mrb[0].mxu0
          %v428 = vadd.f32 0.0, %v427
          %429 = vdwg.mxu0
          %v430 = vpack.c.bf16 %v416, %v412
          %v431 = vpack.c.bf16 %v418, %v414
          %v432 = vpack.c.bf16 %v426, %v422
          %v433 = vpack.c.bf16 %v428, %v424
          %434 = vst [vmem:[#allocation3] sm:$0xff] %v430
          %435 = vst [vmem:[#allocation3 + $0x8] sm:$0xff] %v431
          %436 = vst [vmem:[#allocation3 + $0x10] sm:$0xff] %v432
          %437 = vst [vmem:[#allocation3 + $0x18] sm:$0xff] %v433
          %v438 = vld [vmem:[%s2] sm:$0xf]
          %v440 = vsel %vm289, %v438, 0
          %442 = vmatprep.subr.bf16.mxu0 %v272
          %443 = vmatpush1.bf16.msra.mxu0 %v271
          %444 = vmatprep.subr.bf16.mxu0 %v274
          %445 = vmatpush1.bf16.msra.mxu0 %v273
          %446 = vmatprep.subr.bf16.mxu0 0
          %447 = vmatpush1.bf16.msra.mxu0 0
          %448 = vmatprep.subr.bf16.mxu0 0
          %449 = vmatpush1.bf16.msra.mxu0 0
          %450 = vmatprep.subr.bf16.mxu0 0
          %451 = vmatpush1.bf16.msra.mxu0 0
          %452 = vmatprep.subr.bf16.mxu0 0
          %453 = vmatpush1.bf16.msra.mxu0 0
          %454 = vmatprep.subr.bf16.mxu0 0
          %455 = vmatpush1.bf16.msra.mxu0 0
          %456 = vmatprep.subr.bf16.mxu0 0
          %457 = vmatpush1.bf16.msra.mxu0 0
          %458 = vmatprep.subr.bf16.mxu0 0
          %459 = vmatpush1.bf16.msra.mxu0 0
          %460 = vmatprep.subr.bf16.mxu0 0
          %461 = vmatpush1.bf16.msra.mxu0 0
          %462 = vmatprep.subr.bf16.mxu0 0
          %463 = vmatpush1.bf16.msra.mxu0 0
          %464 = vmatprep.subr.bf16.mxu0 0
          %465 = vmatpush1.bf16.msra.mxu0 0
          %466 = vmatprep.subr.bf16.mxu0 0
          %467 = vmatpush1.bf16.msra.mxu0 0
          %468 = vmatprep.subr.bf16.mxu0 0
          %469 = vmatpush1.bf16.msra.mxu0 0
          %470 = vmatprep.subr.bf16.mxu0 0
          %471 = vmatpush1.bf16.msra.mxu0 0
          %472 = vmatprep.subr.bf16.mxu0 0
          %473 = vmatpush1.bf16.msra.mxu0 0
          %474 = vmatprep.mubr.bf16.mxu0 0
          %475 = vmatmul.mubr.bf16.gmra.mrb[0].mxu0 %v440
          %v476 = vpop.f32.mrb[0].mxu0
          %v477 = vadd.f32 0.0, %v476
          %v478 = vpop.f32.mrb[0].mxu0
          %v479 = vadd.f32 0.0, %v478
          %v480 = vpop.f32.mrb[0].mxu0
          %v481 = vpop.f32.mrb[0].mxu0
          %482 = vdwg.mxu0
          %v485 = vcombine.low %v477, %v479
          %v487 = vunpack.c.l.s4 1966171168
          %v488 = vunpack.c.0.s8 %v487
          %v489 = vlaneseq
          %v490 = vshrl.u32 %v489, 7
          %v491 = vsub.s32 %v488, %v490
          %v492 = vrot.slane %v485, %v491
          %v494 = vunpack.c.l.s4 1966171168
          %v495 = vunpack.c.0.s8 %v494
          %v496 = vlaneseq
          %v497 = vshrl.u32 %v496, 7
          %v498 = vsub.s32 %v495, %v497
          %v499 = vrot.slane %v492, %v498
          %v501 = vlaneseq
          %vm502 = vcmp.ge.s32.totalorder %v501, 0
          %vm503 = vcmp.lt.s32.totalorder %v501, 256
          %vm504 = vmand %vm502, %vm503
          %505 = vst.msk [vmem:[#allocation4] sm:$0x3] %vm504, %v499
        $region48: #{tpu_custom_call.1} parent=39 // pred_fallthru
          _
        %s506 = smul.u32 %s27, 256
        %s507 = sshra.s32 %s506, 7
        %s508 = sand.u32 %s506, 127
        %s509 = smul.addr %s507, 8
        %s510 = scalar_lea.vmem %s230, %s509 [#allocation5]
        %v511 = vld [vmem:[%s510] sm:$0xff]
        %v512 = vld [vmem:[%s510 + $0x8] sm:$0xff]
        %v513 = vld [vmem:[%s510 + $0x10] sm:$0xff]
        %v514 = vld [vmem:[%s510 + $0x18] sm:$0xff]
        %v515 = vld [vmem:[%s510 + $0x20] sm:$0xff]
        %v516 = vld [vmem:[%s510 + $0x28] sm:$0xff]
        %v517 = vld [vmem:[%s510 + $0x30] sm:$0xff]
        %v518 = vld [vmem:[%s510 + $0x38] sm:$0xff]
        %519 = vxpose.xlu0.b32.start [1/16] %v511, 128
        %520 = vxpose.xlu0.b32.cont [2/16] %v513, 128
        %521 = vxpose.xlu0.b32.cont [3/16] %v515, 128
        %522 = vxpose.xlu0.b32.cont [4/16] %v517, 128
        %523 = vxpose.xlu0.b32.cont [5/16] 0.0, 128
        %524 = vxpose.xlu0.b32.cont [6/16] 0.0, 128
        %525 = vxpose.xlu0.b32.cont [7/16] 0.0, 128
        %526 = vxpose.xlu0.b32.cont [8/16] 0.0, 128
        %527 = vxpose.xlu0.b32.cont [9/16] 0.0, 128
        %528 = vxpose.xlu0.b32.cont [10/16] 0.0, 128
        %529 = vxpose.xlu0.b32.cont [11/16] 0.0, 128
        %530 = vxpose.xlu0.b32.cont [12/16] 0.0, 128
        %531 = vxpose.xlu0.b32.cont [13/16] 0.0, 128
        %532 = vxpose.xlu0.b32.cont [14/16] 0.0, 128
        %533 = vxpose.xlu0.b32.cont [15/16] 0.0, 128
        %534 = vxpose.xlu0.b32.end [16/16] 0.0, 128
        %v535 = vpop.trf.xlu0
        %v536 = vpop.trf.xlu0
        %v537 = vpop.trf.xlu0
        %v538 = vpop.trf.xlu0
        %v539 = vpop.trf.xlu0
        %v540 = vpop.trf.xlu0
        %v541 = vpop.trf.xlu0
        %v542 = vpop.trf.xlu0
        %v543 = vpop.trf.xlu0
        %v544 = vpop.trf.xlu0
        %v545 = vpop.trf.xlu0
        %v546 = vpop.trf.xlu0
        %v547 = vpop.trf.xlu0
        %v548 = vpop.trf.xlu0
        %v549 = vpop.trf.xlu0
        %v550 = vpop.trf.xlu0
        %551 = vxpose.xlu0.b32.start [1/16] %v512, 128
        %552 = vxpose.xlu0.b32.cont [2/16] %v514, 128
        %553 = vxpose.xlu0.b32.cont [3/16] %v516, 128
        %554 = vxpose.xlu0.b32.cont [4/16] %v518, 128
        %555 = vxpose.xlu0.b32.cont [5/16] 0.0, 128
        %556 = vxpose.xlu0.b32.cont [6/16] 0.0, 128
        %557 = vxpose.xlu0.b32.cont [7/16] 0.0, 128
        %558 = vxpose.xlu0.b32.cont [8/16] 0.0, 128
        %559 = vxpose.xlu0.b32.cont [9/16] 0.0, 128
        %560 = vxpose.xlu0.b32.cont [10/16] 0.0, 128
        %561 = vxpose.xlu0.b32.cont [11/16] 0.0, 128
        %562 = vxpose.xlu0.b32.cont [12/16] 0.0, 128
        %563 = vxpose.xlu0.b32.cont [13/16] 0.0, 128
        %564 = vxpose.xlu0.b32.cont [14/16] 0.0, 128
        %565 = vxpose.xlu0.b32.cont [15/16] 0.0, 128
        %566 = vxpose.xlu0.b32.end [16/16] 0.0, 128
        %v567 = vpop.trf.xlu0
        %v568 = vpop.trf.xlu0
        %v569 = vpop.trf.xlu0
        %v570 = vpop.trf.xlu0
        %v571 = vpop.trf.xlu0
        %v572 = vpop.trf.xlu0
        %v573 = vpop.trf.xlu0
        %v574 = vpop.trf.xlu0
        %v575 = vpop.trf.xlu0
        %v576 = vpop.trf.xlu0
        %v577 = vpop.trf.xlu0
        %v578 = vpop.trf.xlu0
        %v579 = vpop.trf.xlu0
        %v580 = vpop.trf.xlu0
        %v581 = vpop.trf.xlu0
        %v582 = vpop.trf.xlu0
        %v583 = vpack.c.bf16 %v536, %v535
        %v584 = vpack.c.bf16 %v538, %v537
        %v585 = vpack.c.bf16 %v540, %v539
        %v586 = vpack.c.bf16 %v542, %v541
        %v587 = vpack.c.bf16 %v544, %v543
        %v588 = vpack.c.bf16 %v546, %v545
        %v589 = vpack.c.bf16 %v548, %v547
        %v590 = vpack.c.bf16 %v550, %v549
        %v591 = vpack.c.bf16 %v568, %v567
        %v592 = vpack.c.bf16 %v570, %v569
        %v593 = vpack.c.bf16 %v572, %v571
        %v594 = vpack.c.bf16 %v574, %v573
        %v595 = vpack.c.bf16 %v576, %v575
        %v596 = vpack.c.bf16 %v578, %v577
        %v597 = vpack.c.bf16 %v580, %v579
        %v598 = vpack.c.bf16 %v582, %v581
        %v599 = vld [vmem:[#allocation2] sm:$0xff]
        %v600 = vld [vmem:[#allocation2 + $0x8] sm:$0xff]
        %v601 = vld [vmem:[#allocation2 + $0x10] sm:$0xff]
        %v602 = vld [vmem:[#allocation2 + $0x18] sm:$0xff]
        %v603 = vld [vmem:[#allocation4] sm:$0x3]
        %v605 = vlaneseq
        %v606 = vshrl.u32 %v605, 7
        %v607 = vsub.s32 0, %v606
        %v608 = vrot.slane %v603, %v607
        %v609 = vlaneseq
        %v610 = vshrl.u32 %v609, 7
        %v611 = vsub.s32 1, %v610
        %v612 = vrot.slane %v603, %v611
        %vm615 = vcmask 261120
        %v617 = vsel %vm615, %v583, 0
        %v620 = vsel %vm615, %v584, 0
        %v623 = vsel %vm615, %v585, 0
        %v626 = vsel %vm615, %v586, 0
        %v629 = vsel %vm615, %v587, 0
        %v632 = vsel %vm615, %v588, 0
        %v635 = vsel %vm615, %v589, 0
        %v638 = vsel %vm615, %v590, 0
        %v641 = vsel %vm615, %v591, 0
        %v644 = vsel %vm615, %v592, 0
        %v647 = vsel %vm615, %v593, 0
        %v650 = vsel %vm615, %v594, 0
        %v653 = vsel %vm615, %v595, 0
        %v656 = vsel %vm615, %v596, 0
        %v659 = vsel %vm615, %v597, 0
        %v662 = vsel %vm615, %v598, 0
        %664 = vmatprep.subr.bf16.mxu0 %v600
        %665 = vmatpush1.bf16.msra.mxu0 %v599
        %666 = vmatprep.subr.bf16.mxu0 %v602
        %667 = vmatpush1.bf16.msra.mxu0 %v601
        %668 = vmatprep.subr.bf16.mxu0 0
        %669 = vmatpush1.bf16.msra.mxu0 0
        %670 = vmatprep.subr.bf16.mxu0 0
        %671 = vmatpush1.bf16.msra.mxu0 0
        %672 = vmatprep.subr.bf16.mxu0 0
        %673 = vmatpush1.bf16.msra.mxu0 0
        %674 = vmatprep.subr.bf16.mxu0 0
        %675 = vmatpush1.bf16.msra.mxu0 0
        %676 = vmatprep.subr.bf16.mxu0 0
        %677 = vmatpush1.bf16.msra.mxu0 0
        %678 = vmatprep.subr.bf16.mxu0 0
        %679 = vmatpush1.bf16.msra.mxu0 0
        %680 = vmatprep.subr.bf16.mxu0 0
        %681 = vmatpush1.bf16.msra.mxu0 0
        %682 = vmatprep.subr.bf16.mxu0 0
        %683 = vmatpush1.bf16.msra.mxu0 0
        %684 = vmatprep.subr.bf16.mxu0 0
        %685 = vmatpush1.bf16.msra.mxu0 0
        %686 = vmatprep.subr.bf16.mxu0 0
        %687 = vmatpush1.bf16.msra.mxu0 0
        %688 = vmatprep.subr.bf16.mxu0 0
        %689 = vmatpush1.bf16.msra.mxu0 0
        %690 = vmatprep.subr.bf16.mxu0 0
        %691 = vmatpush1.bf16.msra.mxu0 0
        %692 = vmatprep.subr.bf16.mxu0 0
        %693 = vmatpush1.bf16.msra.mxu0 0
        %694 = vmatprep.subr.bf16.mxu0 0
        %695 = vmatpush1.bf16.msra.mxu0 0
        %696 = vmatprep.mubr.bf16.mxu0 0
        %697 = vmatmul.mubr.bf16.gmra.mrb[0].mxu0 %v617
        %v698 = vpop.f32.mrb[0].mxu0
        %v699 = vadd.f32 %v608, %v698
        %v700 = vpop.f32.mrb[0].mxu0
        %v701 = vadd.f32 %v612, %v700
        %v702 = vpop.f32.mrb[0].mxu0
        %v703 = vadd.f32 %v608, %v702
        %v704 = vpop.f32.mrb[0].mxu0
        %v705 = vadd.f32 %v612, %v704
        %706 = vmatprep.mubr.bf16.mxu0 0
        %707 = vmatmul.mubr.bf16.gmra.mrb[0].mxu0 %v620
        %v708 = vpop.f32.mrb[0].mxu0
        %v709 = vadd.f32 %v608, %v708
        %v710 = vpop.f32.mrb[0].mxu0
        %v711 = vadd.f32 %v612, %v710
        %v712 = vpop.f32.mrb[0].mxu0
        %v713 = vadd.f32 %v608, %v712
        %v714 = vpop.f32.mrb[0].mxu0
        %v715 = vadd.f32 %v612, %v714
        %716 = vmatprep.mubr.bf16.mxu0 0
        %717 = vmatmul.mubr.bf16.gmra.mrb[0].mxu0 %v623
        %v718 = vpop.f32.mrb[0].mxu0
        %v719 = vadd.f32 %v608, %v718
        %v720 = vpop.f32.mrb[0].mxu0
        %v721 = vadd.f32 %v612, %v720
        %v722 = vpop.f32.mrb[0].mxu0
        %v723 = vadd.f32 %v608, %v722
        %v724 = vpop.f32.mrb[0].mxu0
        %v725 = vadd.f32 %v612, %v724
        %726 = vmatprep.mubr.bf16.mxu0 0
        %727 = vmatmul.mubr.bf16.gmra.mrb[0].mxu0 %v626
        %v728 = vpop.f32.mrb[0].mxu0
        %v729 = vadd.f32 %v608, %v728
        %v730 = vpop.f32.mrb[0].mxu0
        %v731 = vadd.f32 %v612, %v730
        %v732 = vpop.f32.mrb[0].mxu0
        %v733 = vadd.f32 %v608, %v732
        %v734 = vpop.f32.mrb[0].mxu0
        %v735 = vadd.f32 %v612, %v734
        %736 = vmatprep.mubr.bf16.mxu0 0
        %737 = vmatmul.mubr.bf16.gmra.mrb[0].mxu0 %v629
        %v738 = vpop.f32.mrb[0].mxu0
        %v739 = vadd.f32 %v608, %v738
        %v740 = vpop.f32.mrb[0].mxu0
        %v741 = vadd.f32 %v612, %v740
        %v742 = vpop.f32.mrb[0].mxu0
        %v743 = vadd.f32 %v608, %v742
        %v744 = vpop.f32.mrb[0].mxu0
        %v745 = vadd.f32 %v612, %v744
        %746 = vmatprep.mubr.bf16.mxu0 0
        %747 = vmatmul.mubr.bf16.gmra.mrb[0].mxu0 %v632
        %v748 = vpop.f32.mrb[0].mxu0
        %v749 = vadd.f32 %v608, %v748
        %v750 = vpop.f32.mrb[0].mxu0
        %v751 = vadd.f32 %v612, %v750
        %v752 = vpop.f32.mrb[0].mxu0
        %v753 = vadd.f32 %v608, %v752
        %v754 = vpop.f32.mrb[0].mxu0
        %v755 = vadd.f32 %v612, %v754
        %756 = vmatprep.mubr.bf16.mxu0 0
        %757 = vmatmul.mubr.bf16.gmra.mrb[0].mxu0 %v635
        %v758 = vpop.f32.mrb[0].mxu0
        %v759 = vadd.f32 %v608, %v758
        %v760 = vpop.f32.mrb[0].mxu0
        %v761 = vadd.f32 %v612, %v760
        %v762 = vpop.f32.mrb[0].mxu0
        %v763 = vadd.f32 %v608, %v762
        %v764 = vpop.f32.mrb[0].mxu0
        %v765 = vadd.f32 %v612, %v764
        %766 = vmatprep.mubr.bf16.mxu0 0
        %767 = vmatmul.mubr.bf16.gmra.mrb[0].mxu0 %v638
        %v768 = vpop.f32.mrb[0].mxu0
        %v769 = vadd.f32 %v608, %v768
        %v770 = vpop.f32.mrb[0].mxu0
        %v771 = vadd.f32 %v612, %v770
        %v772 = vpop.f32.mrb[0].mxu0
        %v773 = vadd.f32 %v608, %v772
        %v774 = vpop.f32.mrb[0].mxu0
        %v775 = vadd.f32 %v612, %v774
        %776 = vmatprep.mubr.bf16.mxu0 0
        %777 = vmatmul.mubr.bf16.gmra.mrb[0].mxu0 %v641
        %v778 = vpop.f32.mrb[0].mxu0
        %v779 = vadd.f32 %v608, %v778
        %v780 = vpop.f32.mrb[0].mxu0
        %v781 = vadd.f32 %v612, %v780
        %v782 = vpop.f32.mrb[0].mxu0
        %v783 = vadd.f32 %v608, %v782
        %v784 = vpop.f32.mrb[0].mxu0
        %v785 = vadd.f32 %v612, %v784
        %786 = vmatprep.mubr.bf16.mxu0 0
        %787 = vmatmul.mubr.bf16.gmra.mrb[0].mxu0 %v644
        %v788 = vpop.f32.mrb[0].mxu0
        %v789 = vadd.f32 %v608, %v788
        %v790 = vpop.f32.mrb[0].mxu0
        %v791 = vadd.f32 %v612, %v790
        %v792 = vpop.f32.mrb[0].mxu0
        %v793 = vadd.f32 %v608, %v792
        %v794 = vpop.f32.mrb[0].mxu0
        %v795 = vadd.f32 %v612, %v794
        %796 = vmatprep.mubr.bf16.mxu0 0
        %797 = vmatmul.mubr.bf16.gmra.mrb[0].mxu0 %v647
        %v798 = vpop.f32.mrb[0].mxu0
        %v799 = vadd.f32 %v608, %v798
        %v800 = vpop.f32.mrb[0].mxu0
        %v801 = vadd.f32 %v612, %v800
        %v802 = vpop.f32.mrb[0].mxu0
        %v803 = vadd.f32 %v608, %v802
        %v804 = vpop.f32.mrb[0].mxu0
        %v805 = vadd.f32 %v612, %v804
        %806 = vmatprep.mubr.bf16.mxu0 0
        %807 = vmatmul.mubr.bf16.gmra.mrb[0].mxu0 %v650
        %v808 = vpop.f32.mrb[0].mxu0
        %v809 = vadd.f32 %v608, %v808
        %v810 = vpop.f32.mrb[0].mxu0
        %v811 = vadd.f32 %v612, %v810
        %v812 = vpop.f32.mrb[0].mxu0
        %v813 = vadd.f32 %v608, %v812
        %v814 = vpop.f32.mrb[0].mxu0
        %v815 = vadd.f32 %v612, %v814
        %816 = vmatprep.mubr.bf16.mxu0 0
        %817 = vmatmul.mubr.bf16.gmra.mrb[0].mxu0 %v653
        %v818 = vpop.f32.mrb[0].mxu0
        %v819 = vadd.f32 %v608, %v818
        %v820 = vpop.f32.mrb[0].mxu0
        %v821 = vadd.f32 %v612, %v820
        %v822 = vpop.f32.mrb[0].mxu0
        %v823 = vadd.f32 %v608, %v822
        %v824 = vpop.f32.mrb[0].mxu0
        %v825 = vadd.f32 %v612, %v824
        %826 = vmatprep.mubr.bf16.mxu0 0
        %827 = vmatmul.mubr.bf16.gmra.mrb[0].mxu0 %v656
        %v828 = vpop.f32.mrb[0].mxu0
        %v829 = vadd.f32 %v608, %v828
        %v830 = vpop.f32.mrb[0].mxu0
        %v831 = vadd.f32 %v612, %v830
        %v832 = vpop.f32.mrb[0].mxu0
        %v833 = vadd.f32 %v608, %v832
        %v834 = vpop.f32.mrb[0].mxu0
        %v835 = vadd.f32 %v612, %v834
        %836 = vmatprep.mubr.bf16.mxu0 0
        %837 = vmatmul.mubr.bf16.gmra.mrb[0].mxu0 %v659
        %v838 = vpop.f32.mrb[0].mxu0
        %v839 = vadd.f32 %v608, %v838
        %v840 = vpop.f32.mrb[0].mxu0
        %v841 = vadd.f32 %v612, %v840
        %v842 = vpop.f32.mrb[0].mxu0
        %v843 = vadd.f32 %v608, %v842
        %v844 = vpop.f32.mrb[0].mxu0
        %v845 = vadd.f32 %v612, %v844
        %846 = vmatprep.mubr.bf16.mxu0 0
        %847 = vmatmul.mubr.bf16.gmra.mrb[0].mxu0 %v662
        %v848 = vpop.f32.mrb[0].mxu0
        %v849 = vadd.f32 %v608, %v848
        %v850 = vpop.f32.mrb[0].mxu0
        %v851 = vadd.f32 %v612, %v850
        %v852 = vpop.f32.mrb[0].mxu0
        %v853 = vadd.f32 %v608, %v852
        %v854 = vpop.f32.mrb[0].mxu0
        %v855 = vadd.f32 %v612, %v854
        %856 = vdwg.mxu0
        %v857 = vmax.f32 %v699, %v701
        %858 = vmax.xlane.f32.xlu0 %v857
        %v859 = vpop.xlane.xlu0 %858
        %v860 = vmax.f32 %v703, %v705
        %861 = vmax.xlane.f32.xlu0 %v860
        %v862 = vpop.xlane.xlu0 %861
        %v863 = vmax.f32 %v709, %v711
        %864 = vmax.xlane.f32.xlu0 %v863
        %v865 = vpop.xlane.xlu0 %864
        %v866 = vmax.f32 %v713, %v715
        %867 = vmax.xlane.f32.xlu0 %v866
        %v868 = vpop.xlane.xlu0 %867
        %v869 = vmax.f32 %v719, %v721
        %870 = vmax.xlane.f32.xlu0 %v869
        %v871 = vpop.xlane.xlu0 %870
        %v872 = vmax.f32 %v723, %v725
        %873 = vmax.xlane.f32.xlu0 %v872
        %v874 = vpop.xlane.xlu0 %873
        %v875 = vmax.f32 %v729, %v731
        %876 = vmax.xlane.f32.xlu0 %v875
        %v877 = vpop.xlane.xlu0 %876
        %v878 = vmax.f32 %v733, %v735
        %879 = vmax.xlane.f32.xlu0 %v878
        %v880 = vpop.xlane.xlu0 %879
        %v881 = vmax.f32 %v739, %v741
        %882 = vmax.xlane.f32.xlu0 %v881
        %v883 = vpop.xlane.xlu0 %882
        %v884 = vmax.f32 %v743, %v745
        %885 = vmax.xlane.f32.xlu0 %v884
        %v886 = vpop.xlane.xlu0 %885
        %v887 = vmax.f32 %v749, %v751
        %888 = vmax.xlane.f32.xlu0 %v887
        %v889 = vpop.xlane.xlu0 %888
        %v890 = vmax.f32 %v753, %v755
        %891 = vmax.xlane.f32.xlu0 %v890
        %v892 = vpop.xlane.xlu0 %891
        %v893 = vmax.f32 %v759, %v761
        %894 = vmax.xlane.f32.xlu0 %v893
        %v895 = vpop.xlane.xlu0 %894
        %v896 = vmax.f32 %v763, %v765
        %897 = vmax.xlane.f32.xlu0 %v896
        %v898 = vpop.xlane.xlu0 %897
        %v899 = vmax.f32 %v769, %v771
        %900 = vmax.xlane.f32.xlu0 %v899
        %v901 = vpop.xlane.xlu0 %900
        %v902 = vmax.f32 %v773, %v775
        %903 = vmax.xlane.f32.xlu0 %v902
        %v904 = vpop.xlane.xlu0 %903
        %v905 = vmax.f32 %v779, %v781
        %906 = vmax.xlane.f32.xlu0 %v905
        %v907 = vpop.xlane.xlu0 %906
        %v908 = vmax.f32 %v783, %v785
        %909 = vmax.xlane.f32.xlu0 %v908
        %v910 = vpop.xlane.xlu0 %909
        %v911 = vmax.f32 %v789, %v791
        %912 = vmax.xlane.f32.xlu0 %v911
        %v913 = vpop.xlane.xlu0 %912
        %v914 = vmax.f32 %v793, %v795
        %915 = vmax.xlane.f32.xlu0 %v914
        %v916 = vpop.xlane.xlu0 %915
        %v917 = vmax.f32 %v799, %v801
        %918 = vmax.xlane.f32.xlu0 %v917
        %v919 = vpop.xlane.xlu0 %918
        %v920 = vmax.f32 %v803, %v805
        %921 = vmax.xlane.f32.xlu0 %v920
        %v922 = vpop.xlane.xlu0 %921
        %v923 = vmax.f32 %v809, %v811
        %924 = vmax.xlane.f32.xlu0 %v923
        %v925 = vpop.xlane.xlu0 %924
        %v926 = vmax.f32 %v813, %v815
        %927 = vmax.xlane.f32.xlu0 %v926
        %v928 = vpop.xlane.xlu0 %927
        %v929 = vmax.f32 %v819, %v821
        %930 = vmax.xlane.f32.xlu0 %v929
        %v931 = vpop.xlane.xlu0 %930
        %v932 = vmax.f32 %v823, %v825
        %933 = vmax.xlane.f32.xlu0 %v932
        %v934 = vpop.xlane.xlu0 %933
        %v935 = vmax.f32 %v829, %v831
        %936 = vmax.xlane.f32.xlu0 %v935
        %v937 = vpop.xlane.xlu0 %936
        %v938 = vmax.f32 %v833, %v835
        %939 = vmax.xlane.f32.xlu0 %v938
        %v940 = vpop.xlane.xlu0 %939
        %v941 = vmax.f32 %v839, %v841
        %942 = vmax.xlane.f32.xlu0 %v941
        %v943 = vpop.xlane.xlu0 %942
        %v944 = vmax.f32 %v843, %v845
        %945 = vmax.xlane.f32.xlu0 %v944
        %v946 = vpop.xlane.xlu0 %945
        %v947 = vmax.f32 %v849, %v851
        %948 = vmax.xlane.f32.xlu0 %v947
        %v949 = vpop.xlane.xlu0 %948
        %v950 = vmax.f32 %v853, %v855
        %951 = vmax.xlane.f32.xlu0 %v950
        %v952 = vpop.xlane.xlu0 %951
        %v953 = vsub.f32 %v699, %v859
        %v954 = vsub.f32 %v701, %v859
        %v955 = vsub.f32 %v703, %v862
        %v956 = vsub.f32 %v705, %v862
        %v957 = vsub.f32 %v709, %v865
        %v958 = vsub.f32 %v711, %v865
        %v959 = vsub.f32 %v713, %v868
        %v960 = vsub.f32 %v715, %v868
        %v961 = vsub.f32 %v719, %v871
        %v962 = vsub.f32 %v721, %v871
        %v963 = vsub.f32 %v723, %v874
        %v964 = vsub.f32 %v725, %v874
        %v965 = vsub.f32 %v729, %v877
        %v966 = vsub.f32 %v731, %v877
        %v967 = vsub.f32 %v733, %v880
        %v968 = vsub.f32 %v735, %v880
        %v969 = vsub.f32 %v739, %v883
        %v970 = vsub.f32 %v741, %v883
        %v971 = vsub.f32 %v743, %v886
        %v972 = vsub.f32 %v745, %v886
        %v973 = vsub.f32 %v749, %v889
        %v974 = vsub.f32 %v751, %v889
        %v975 = vsub.f32 %v753, %v892
        %v976 = vsub.f32 %v755, %v892
        %v977 = vsub.f32 %v759, %v895
        %v978 = vsub.f32 %v761, %v895
        %v979 = vsub.f32 %v763, %v898
        %v980 = vsub.f32 %v765, %v898
        %v981 = vsub.f32 %v769, %v901
        %v982 = vsub.f32 %v771, %v901
        %v983 = vsub.f32 %v773, %v904
        %v984 = vsub.f32 %v775, %v904
        %v985 = vsub.f32 %v779, %v907
        %v986 = vsub.f32 %v781, %v907
        %v987 = vsub.f32 %v783, %v910
        %v988 = vsub.f32 %v785, %v910
        %v989 = vsub.f32 %v789, %v913
        %v990 = vsub.f32 %v791, %v913
        %v991 = vsub.f32 %v793, %v916
        %v992 = vsub.f32 %v795, %v916
        %v993 = vsub.f32 %v799, %v919
        %v994 = vsub.f32 %v801, %v919
        %v995 = vsub.f32 %v803, %v922
        %v996 = vsub.f32 %v805, %v922
        %v997 = vsub.f32 %v809, %v925
        %v998 = vsub.f32 %v811, %v925
        %v999 = vsub.f32 %v813, %v928
        %v1000 = vsub.f32 %v815, %v928
        %v1001 = vsub.f32 %v819, %v931
        %v1002 = vsub.f32 %v821, %v931
        %v1003 = vsub.f32 %v823, %v934
        %v1004 = vsub.f32 %v825, %v934
        %v1005 = vsub.f32 %v829, %v937
        %v1006 = vsub.f32 %v831, %v937
        %v1007 = vsub.f32 %v833, %v940
        %v1008 = vsub.f32 %v835, %v940
        %v1009 = vsub.f32 %v839, %v943
        %v1010 = vsub.f32 %v841, %v943
        %v1011 = vsub.f32 %v843, %v946
        %v1012 = vsub.f32 %v845, %v946
        %v1013 = vsub.f32 %v849, %v949
        %v1014 = vsub.f32 %v851, %v949
        %v1015 = vsub.f32 %v853, %v952
        %v1016 = vsub.f32 %v855, %v952
        %v1017 = vmul.f32 %v953, 1.442695
        %v1018 = vpow.pop %v1017
        %v1019 = vmul.f32 %v954, 1.442695
        %v1020 = vpow.pop %v1019
        %v1021 = vmul.f32 %v955, 1.442695
        %v1022 = vpow.pop %v1021
        %v1023 = vmul.f32 %v956, 1.442695
        %v1024 = vpow.pop %v1023
        %v1025 = vmul.f32 %v957, 1.442695
        %v1026 = vpow.pop %v1025
        %v1027 = vmul.f32 %v958, 1.442695
        %v1028 = vpow.pop %v1027
        %v1029 = vmul.f32 %v959, 1.442695
        %v1030 = vpow.pop %v1029
        %v1031 = vmul.f32 %v960, 1.442695
        %v1032 = vpow.pop %v1031
        %v1033 = vmul.f32 %v961, 1.442695
        %v1034 = vpow.pop %v1033
        %v1035 = vmul.f32 %v962, 1.442695
        %v1036 = vpow.pop %v1035
        %v1037 = vmul.f32 %v963, 1.442695
        %v1038 = vpow.pop %v1037
        %v1039 = vmul.f32 %v964, 1.442695
        %v1040 = vpow.pop %v1039
        %v1041 = vmul.f32 %v965, 1.442695
        %v1042 = vpow.pop %v1041
        %v1043 = vmul.f32 %v966, 1.442695
        %v1044 = vpow.pop %v1043
        %v1045 = vmul.f32 %v967, 1.442695
        %v1046 = vpow.pop %v1045
        %v1047 = vmul.f32 %v968, 1.442695
        %v1048 = vpow.pop %v1047
        %v1049 = vmul.f32 %v969, 1.442695
        %v1050 = vpow.pop %v1049
        %v1051 = vmul.f32 %v970, 1.442695
        %v1052 = vpow.pop %v1051
        %v1053 = vmul.f32 %v971, 1.442695
        %v1054 = vpow.pop %v1053
        %v1055 = vmul.f32 %v972, 1.442695
        %v1056 = vpow.pop %v1055
        %v1057 = vmul.f32 %v973, 1.442695
        %v1058 = vpow.pop %v1057
        %v1059 = vmul.f32 %v974, 1.442695
        %v1060 = vpow.pop %v1059
        %v1061 = vmul.f32 %v975, 1.442695
        %v1062 = vpow.pop %v1061
        %v1063 = vmul.f32 %v976, 1.442695
        %v1064 = vpow.pop %v1063
        %v1065 = vmul.f32 %v977, 1.442695
        %v1066 = vpow.pop %v1065
        %v1067 = vmul.f32 %v978, 1.442695
        %v1068 = vpow.pop %v1067
        %v1069 = vmul.f32 %v979, 1.442695
        %v1070 = vpow.pop %v1069
        %v1071 = vmul.f32 %v980, 1.442695
        %v1072 = vpow.pop %v1071
        %v1073 = vmul.f32 %v981, 1.442695
        %v1074 = vpow.pop %v1073
        %v1075 = vmul.f32 %v982, 1.442695
        %v1076 = vpow.pop %v1075
        %v1077 = vmul.f32 %v983, 1.442695
        %v1078 = vpow.pop %v1077
        %v1079 = vmul.f32 %v984, 1.442695
        %v1080 = vpow.pop %v1079
        %v1081 = vmul.f32 %v985, 1.442695
        %v1082 = vpow.pop %v1081
        %v1083 = vmul.f32 %v986, 1.442695
        %v1084 = vpow.pop %v1083
        %v1085 = vmul.f32 %v987, 1.442695
        %v1086 = vpow.pop %v1085
        %v1087 = vmul.f32 %v988, 1.442695
        %v1088 = vpow.pop %v1087
        %v1089 = vmul.f32 %v989, 1.442695
        %v1090 = vpow.pop %v1089
        %v1091 = vmul.f32 %v990, 1.442695
        %v1092 = vpow.pop %v1091
        %v1093 = vmul.f32 %v991, 1.442695
        %v1094 = vpow.pop %v1093
        %v1095 = vmul.f32 %v992, 1.442695
        %v1096 = vpow.pop %v1095
        %v1097 = vmul.f32 %v993, 1.442695
        %v1098 = vpow.pop %v1097
        %v1099 = vmul.f32 %v994, 1.442695
        %v1100 = vpow.pop %v1099
        %v1101 = vmul.f32 %v995, 1.442695
        %v1102 = vpow.pop %v1101
        %v1103 = vmul.f32 %v996, 1.442695
        %v1104 = vpow.pop %v1103
        %v1105 = vmul.f32 %v997, 1.442695
        %v1106 = vpow.pop %v1105
        %v1107 = vmul.f32 %v998, 1.442695
        %v1108 = vpow.pop %v1107
        %v1109 = vmul.f32 %v999, 1.442695
        %v1110 = vpow.pop %v1109
        %v1111 = vmul.f32 %v1000, 1.442695
        %v1112 = vpow.pop %v1111
        %v1113 = vmul.f32 %v1001, 1.442695
        %v1114 = vpow.pop %v1113
        %v1115 = vmul.f32 %v1002, 1.442695
        %v1116 = vpow.pop %v1115
        %v1117 = vmul.f32 %v1003, 1.442695
        %v1118 = vpow.pop %v1117
        %v1119 = vmul.f32 %v1004, 1.442695
        %v1120 = vpow.pop %v1119
        %v1121 = vmul.f32 %v1005, 1.442695
        %v1122 = vpow.pop %v1121
        %v1123 = vmul.f32 %v1006, 1.442695
        %v1124 = vpow.pop %v1123
        %v1125 = vmul.f32 %v1007, 1.442695
        %v1126 = vpow.pop %v1125
        %v1127 = vmul.f32 %v1008, 1.442695
        %v1128 = vpow.pop %v1127
        %v1129 = vmul.f32 %v1009, 1.442695
        %v1130 = vpow.pop %v1129
        %v1131 = vmul.f32 %v1010, 1.442695
        %v1132 = vpow.pop %v1131
        %v1133 = vmul.f32 %v1011, 1.442695
        %v1134 = vpow.pop %v1133
        %v1135 = vmul.f32 %v1012, 1.442695
        %v1136 = vpow.pop %v1135
        %v1137 = vmul.f32 %v1013, 1.442695
        %v1138 = vpow.pop %v1137
        %v1139 = vmul.f32 %v1014, 1.442695
        %v1140 = vpow.pop %v1139
        %v1141 = vmul.f32 %v1015, 1.442695
        %v1142 = vpow.pop %v1141
        %v1143 = vmul.f32 %v1016, 1.442695
        %v1144 = vpow.pop %v1143
        %v1145 = vadd.f32 %v1018, %v1020
        %1146 = vadd.xlane.f32.xlu0 %v1145
        %v1147 = vpop.xlane.xlu0 %1146
        %v1148 = vadd.f32 %v1022, %v1024
        %1149 = vadd.xlane.f32.xlu0 %v1148
        %v1150 = vpop.xlane.xlu0 %1149
        %v1151 = vadd.f32 %v1026, %v1028
        %1152 = vadd.xlane.f32.xlu0 %v1151
        %v1153 = vpop.xlane.xlu0 %1152
        %v1154 = vadd.f32 %v1030, %v1032
        %1155 = vadd.xlane.f32.xlu0 %v1154
        %v1156 = vpop.xlane.xlu0 %1155
        %v1157 = vadd.f32 %v1034, %v1036
        %1158 = vadd.xlane.f32.xlu0 %v1157
        %v1159 = vpop.xlane.xlu0 %1158
        %v1160 = vadd.f32 %v1038, %v1040
        %1161 = vadd.xlane.f32.xlu0 %v1160
        %v1162 = vpop.xlane.xlu0 %1161
        %v1163 = vadd.f32 %v1042, %v1044
        %1164 = vadd.xlane.f32.xlu0 %v1163
        %v1165 = vpop.xlane.xlu0 %1164
        %v1166 = vadd.f32 %v1046, %v1048
        %1167 = vadd.xlane.f32.xlu0 %v1166
        %v1168 = vpop.xlane.xlu0 %1167
        %v1169 = vadd.f32 %v1050, %v1052
        %1170 = vadd.xlane.f32.xlu0 %v1169
        %v1171 = vpop.xlane.xlu0 %1170
        %v1172 = vadd.f32 %v1054, %v1056
        %1173 = vadd.xlane.f32.xlu0 %v1172
        %v1174 = vpop.xlane.xlu0 %1173
        %v1175 = vadd.f32 %v1058, %v1060
        %1176 = vadd.xlane.f32.xlu0 %v1175
        %v1177 = vpop.xlane.xlu0 %1176
        %v1178 = vadd.f32 %v1062, %v1064
        %1179 = vadd.xlane.f32.xlu0 %v1178
        %v1180 = vpop.xlane.xlu0 %1179
        %v1181 = vadd.f32 %v1066, %v1068
        %1182 = vadd.xlane.f32.xlu0 %v1181
        %v1183 = vpop.xlane.xlu0 %1182
        %v1184 = vadd.f32 %v1070, %v1072
        %1185 = vadd.xlane.f32.xlu0 %v1184
        %v1186 = vpop.xlane.xlu0 %1185
        %v1187 = vadd.f32 %v1074, %v1076
        %1188 = vadd.xlane.f32.xlu0 %v1187
        %v1189 = vpop.xlane.xlu0 %1188
        %v1190 = vadd.f32 %v1078, %v1080
        %1191 = vadd.xlane.f32.xlu0 %v1190
        %v1192 = vpop.xlane.xlu0 %1191
        %v1193 = vadd.f32 %v1082, %v1084
        %1194 = vadd.xlane.f32.xlu0 %v1193
        %v1195 = vpop.xlane.xlu0 %1194
        %v1196 = vadd.f32 %v1086, %v1088
        %1197 = vadd.xlane.f32.xlu0 %v1196
        %v1198 = vpop.xlane.xlu0 %1197
        %v1199 = vadd.f32 %v1090, %v1092
        %1200 = vadd.xlane.f32.xlu0 %v1199
        %v1201 = vpop.xlane.xlu0 %1200
        %v1202 = vadd.f32 %v1094, %v1096
        %1203 = vadd.xlane.f32.xlu0 %v1202
        %v1204 = vpop.xlane.xlu0 %1203
        %v1205 = vadd.f32 %v1098, %v1100
        %1206 = vadd.xlane.f32.xlu0 %v1205
        %v1207 = vpop.xlane.xlu0 %1206
        %v1208 = vadd.f32 %v1102, %v1104
        %1209 = vadd.xlane.f32.xlu0 %v1208
        %v1210 = vpop.xlane.xlu0 %1209
        %v1211 = vadd.f32 %v1106, %v1108
        %1212 = vadd.xlane.f32.xlu0 %v1211
        %v1213 = vpop.xlane.xlu0 %1212
        %v1214 = vadd.f32 %v1110, %v1112
        %1215 = vadd.xlane.f32.xlu0 %v1214
        %v1216 = vpop.xlane.xlu0 %1215
        %v1217 = vadd.f32 %v1114, %v1116
        %1218 = vadd.xlane.f32.xlu0 %v1217
        %v1219 = vpop.xlane.xlu0 %1218
        %v1220 = vadd.f32 %v1118, %v1120
        %1221 = vadd.xlane.f32.xlu0 %v1220
        %v1222 = vpop.xlane.xlu0 %1221
        %v1223 = vadd.f32 %v1122, %v1124
        %1224 = vadd.xlane.f32.xlu0 %v1223
        %v1225 = vpop.xlane.xlu0 %1224
        %v1226 = vadd.f32 %v1126, %v1128
        %1227 = vadd.xlane.f32.xlu0 %v1226
        %v1228 = vpop.xlane.xlu0 %1227
        %v1229 = vadd.f32 %v1130, %v1132
        %1230 = vadd.xlane.f32.xlu0 %v1229
        %v1231 = vpop.xlane.xlu0 %1230
        %v1232 = vadd.f32 %v1134, %v1136
        %1233 = vadd.xlane.f32.xlu0 %v1232
        %v1234 = vpop.xlane.xlu0 %1233
        %v1235 = vadd.f32 %v1138, %v1140
        %1236 = vadd.xlane.f32.xlu0 %v1235
        %v1237 = vpop.xlane.xlu0 %1236
        %v1238 = vadd.f32 %v1142, %v1144
        %1239 = vadd.xlane.f32.xlu0 %v1238
        %v1240 = vpop.xlane.xlu0 %1239
        %v1241 = vrcp.pop %v1147
        %v1242 = vrcp.pop %v1150
        %v1243 = vrcp.pop %v1153
        %v1244 = vrcp.pop %v1156
        %v1245 = vrcp.pop %v1159
        %v1246 = vrcp.pop %v1162
        %v1247 = vrcp.pop %v1165
        %v1248 = vrcp.pop %v1168
        %v1249 = vrcp.pop %v1171
        %v1250 = vrcp.pop %v1174
        %v1251 = vrcp.pop %v1177
        %v1252 = vrcp.pop %v1180
        %v1253 = vrcp.pop %v1183
        %v1254 = vrcp.pop %v1186
        %v1255 = vrcp.pop %v1189
        %v1256 = vrcp.pop %v1192
        %v1257 = vrcp.pop %v1195
        %v1258 = vrcp.pop %v1198
        %v1259 = vrcp.pop %v1201
        %v1260 = vrcp.pop %v1204
        %v1261 = vrcp.pop %v1207
        %v1262 = vrcp.pop %v1210
        %v1263 = vrcp.pop %v1213
        %v1264 = vrcp.pop %v1216
        %v1265 = vrcp.pop %v1219
        %v1266 = vrcp.pop %v1222
        %v1267 = vrcp.pop %v1225
        %v1268 = vrcp.pop %v1228
        %v1269 = vrcp.pop %v1231
        %v1270 = vrcp.pop %v1234
        %v1271 = vrcp.pop %v1237
        %v1272 = vrcp.pop %v1240
        %v1273 = vmul.f32 %v1018, %v1241
        %v1274 = vmul.f32 %v1020, %v1241
        %v1275 = vmul.f32 %v1022, %v1242
        %v1276 = vmul.f32 %v1024, %v1242
        %v1277 = vmul.f32 %v1026, %v1243
        %v1278 = vmul.f32 %v1028, %v1243
        %v1279 = vmul.f32 %v1030, %v1244
        %v1280 = vmul.f32 %v1032, %v1244
        %v1281 = vmul.f32 %v1034, %v1245
        %v1282 = vmul.f32 %v1036, %v1245
        %v1283 = vmul.f32 %v1038, %v1246
        %v1284 = vmul.f32 %v1040, %v1246
        %v1285 = vmul.f32 %v1042, %v1247
        %v1286 = vmul.f32 %v1044, %v1247
        %v1287 = vmul.f32 %v1046, %v1248
        %v1288 = vmul.f32 %v1048, %v1248
        %v1289 = vmul.f32 %v1050, %v1249
        %v1290 = vmul.f32 %v1052, %v1249
        %v1291 = vmul.f32 %v1054, %v1250
        %v1292 = vmul.f32 %v1056, %v1250
        %v1293 = vmul.f32 %v1058, %v1251
        %v1294 = vmul.f32 %v1060, %v1251
        %v1295 = vmul.f32 %v1062, %v1252
        %v1296 = vmul.f32 %v1064, %v1252
        %v1297 = vmul.f32 %v1066, %v1253
        %v1298 = vmul.f32 %v1068, %v1253
        %v1299 = vmul.f32 %v1070, %v1254
        %v1300 = vmul.f32 %v1072, %v1254
        %v1301 = vmul.f32 %v1074, %v1255
        %v1302 = vmul.f32 %v1076, %v1255
        %v1303 = vmul.f32 %v1078, %v1256
        %v1304 = vmul.f32 %v1080, %v1256
        %v1305 = vmul.f32 %v1082, %v1257
        %v1306 = vmul.f32 %v1084, %v1257
        %v1307 = vmul.f32 %v1086, %v1258
        %v1308 = vmul.f32 %v1088, %v1258
        %v1309 = vmul.f32 %v1090, %v1259
        %v1310 = vmul.f32 %v1092, %v1259
        %v1311 = vmul.f32 %v1094, %v1260
        %v1312 = vmul.f32 %v1096, %v1260
        %v1313 = vmul.f32 %v1098, %v1261
        %v1314 = vmul.f32 %v1100, %v1261
        %v1315 = vmul.f32 %v1102, %v1262
        %v1316 = vmul.f32 %v1104, %v1262
        %v1317 = vmul.f32 %v1106, %v1263
        %v1318 = vmul.f32 %v1108, %v1263
        %v1319 = vmul.f32 %v1110, %v1264
        %v1320 = vmul.f32 %v1112, %v1264
        %v1321 = vmul.f32 %v1114, %v1265
        %v1322 = vmul.f32 %v1116, %v1265
        %v1323 = vmul.f32 %v1118, %v1266
        %v1324 = vmul.f32 %v1120, %v1266
        %v1325 = vmul.f32 %v1122, %v1267
        %v1326 = vmul.f32 %v1124, %v1267
        %v1327 = vmul.f32 %v1126, %v1268
        %v1328 = vmul.f32 %v1128, %v1268
        %v1329 = vmul.f32 %v1130, %v1269
        %v1330 = vmul.f32 %v1132, %v1269
        %v1331 = vmul.f32 %v1134, %v1270
        %v1332 = vmul.f32 %v1136, %v1270
        %v1333 = vmul.f32 %v1138, %v1271
        %v1334 = vmul.f32 %v1140, %v1271
        %v1335 = vmul.f32 %v1142, %v1272
        %v1336 = vmul.f32 %v1144, %v1272
        %v1337 = vpack.c.bf16 %v1275, %v1273
        %v1338 = vpack.c.bf16 %v1276, %v1274
        %v1339 = vpack.c.bf16 %v1279, %v1277
        %v1340 = vpack.c.bf16 %v1280, %v1278
        %v1341 = vpack.c.bf16 %v1283, %v1281
        %v1342 = vpack.c.bf16 %v1284, %v1282
        %v1343 = vpack.c.bf16 %v1287, %v1285
        %v1344 = vpack.c.bf16 %v1288, %v1286
        %v1345 = vpack.c.bf16 %v1291, %v1289
        %v1346 = vpack.c.bf16 %v1292, %v1290
        %v1347 = vpack.c.bf16 %v1295, %v1293
        %v1348 = vpack.c.bf16 %v1296, %v1294
        %v1349 = vpack.c.bf16 %v1299, %v1297
        %v1350 = vpack.c.bf16 %v1300, %v1298
        %v1351 = vpack.c.bf16 %v1303, %v1301
        %v1352 = vpack.c.bf16 %v1304, %v1302
        %v1353 = vpack.c.bf16 %v1307, %v1305
        %v1354 = vpack.c.bf16 %v1308, %v1306
        %v1355 = vpack.c.bf16 %v1311, %v1309
        %v1356 = vpack.c.bf16 %v1312, %v1310
        %v1357 = vpack.c.bf16 %v1315, %v1313
        %v1358 = vpack.c.bf16 %v1316, %v1314
        %v1359 = vpack.c.bf16 %v1319, %v1317
        %v1360 = vpack.c.bf16 %v1320, %v1318
        %v1361 = vpack.c.bf16 %v1323, %v1321
        %v1362 = vpack.c.bf16 %v1324, %v1322
        %v1363 = vpack.c.bf16 %v1327, %v1325
        %v1364 = vpack.c.bf16 %v1328, %v1326
        %v1365 = vpack.c.bf16 %v1331, %v1329
        %v1366 = vpack.c.bf16 %v1332, %v1330
        %v1367 = vpack.c.bf16 %v1335, %v1333
        %v1368 = vpack.c.bf16 %v1336, %v1334
        %v1369 = vld [vmem:[#allocation3] sm:$0xff]
        %v1370 = vld [vmem:[#allocation3 + $0x8] sm:$0xff]
        %v1371 = vld [vmem:[#allocation3 + $0x10] sm:$0xff]
        %v1372 = vld [vmem:[#allocation3 + $0x18] sm:$0xff]
        %v1373 = vld [vmem:[%s4] sm:$0xff]
        %v1374 = vld [vmem:[%s4 + $0x8] sm:$0xff]
        %v1375 = vld [vmem:[%s4 + $0x10] sm:$0xff]
        %v1376 = vld [vmem:[%s4 + $0x18] sm:$0xff]
        %1378 = vset.pattern.permute.xlu0 0
        %1379 = vperm.xlu0 %1378, %v1373
        %v1380 = vpop.permute.xlu0 %1379
        %1383 = vset.pattern.permute.xlu0 0
        %1384 = vperm.xlu0 %1383, %v1374
        %v1385 = vpop.permute.xlu0 %1384
        %1388 = vset.pattern.permute.xlu0 0
        %1389 = vperm.xlu0 %1388, %v1375
        %v1390 = vpop.permute.xlu0 %1389
        %1393 = vset.pattern.permute.xlu0 0
        %1394 = vperm.xlu0 %1393, %v1376
        %v1395 = vpop.permute.xlu0 %1394
        %1397 = vmatprep.subr.bf16.mxu0 %v1338
        %1398 = vmatpush1.bf16.xpose.msra.mxu0 %v1337
        %1399 = vmatprep.subr.bf16.mxu0 %v1340
        %1400 = vmatpush1.bf16.xpose.msra.mxu0 %v1339
        %1401 = vmatprep.subr.bf16.mxu0 %v1342
        %1402 = vmatpush1.bf16.xpose.msra.mxu0 %v1341
        %1403 = vmatprep.subr.bf16.mxu0 %v1344
        %1404 = vmatpush1.bf16.xpose.msra.mxu0 %v1343
        %1405 = vmatprep.subr.bf16.mxu0 %v1346
        %1406 = vmatpush1.bf16.xpose.msra.mxu0 %v1345
        %1407 = vmatprep.subr.bf16.mxu0 %v1348
        %1408 = vmatpush1.bf16.xpose.msra.mxu0 %v1347
        %1409 = vmatprep.subr.bf16.mxu0 %v1350
        %1410 = vmatpush1.bf16.xpose.msra.mxu0 %v1349
        %1411 = vmatprep.subr.bf16.mxu0 %v1352
        %1412 = vmatpush1.bf16.xpose.msra.mxu0 %v1351
        %1413 = vmatprep.subr.bf16.mxu0 %v1354
        %1414 = vmatpush1.bf16.xpose.msra.mxu0 %v1353
        %1415 = vmatprep.subr.bf16.mxu0 %v1356
        %1416 = vmatpush1.bf16.xpose.msra.mxu0 %v1355
        %1417 = vmatprep.subr.bf16.mxu0 %v1358
        %1418 = vmatpush1.bf16.xpose.msra.mxu0 %v1357
        %1419 = vmatprep.subr.bf16.mxu0 %v1360
        %1420 = vmatpush1.bf16.xpose.msra.mxu0 %v1359
        %1421 = vmatprep.subr.bf16.mxu0 %v1362
        %1422 = vmatpush1.bf16.xpose.msra.mxu0 %v1361
        %1423 = vmatprep.subr.bf16.mxu0 %v1364
        %1424 = vmatpush1.bf16.xpose.msra.mxu0 %v1363
        %1425 = vmatprep.subr.bf16.mxu0 %v1366
        %1426 = vmatpush1.bf16.xpose.msra.mxu0 %v1365
        %1427 = vmatprep.subr.bf16.mxu0 %v1368
        %1428 = vmatpush1.bf16.xpose.msra.mxu0 %v1367
        %1429 = vmatprep.mubr.bf16.mxu0 %v1370
        %1430 = vmatmul.mubr.bf16.gmra.mrb[0].mxu0 %v1369
        %v1431 = vpop.f32.mrb[0].mxu0
        %v1432 = vadd.f32 %v1380, %v1431
        %v1433 = vpop.f32.mrb[0].mxu0
        %v1434 = vadd.f32 %v1380, %v1433
        %v1435 = vpop.f32.mrb[0].mxu0
        %v1436 = vadd.f32 %v1385, %v1435
        %v1437 = vpop.f32.mrb[0].mxu0
        %v1438 = vadd.f32 %v1385, %v1437
        %1439 = vmatprep.mubr.bf16.mxu0 %v1372
        %1440 = vmatmul.mubr.bf16.gmra.mrb[0].mxu0 %v1371
        %v1441 = vpop.f32.mrb[0].mxu0
        %v1442 = vadd.f32 %v1390, %v1441
        %v1443 = vpop.f32.mrb[0].mxu0
        %v1444 = vadd.f32 %v1390, %v1443
        %v1445 = vpop.f32.mrb[0].mxu0
        %v1446 = vadd.f32 %v1395, %v1445
        %v1447 = vpop.f32.mrb[0].mxu0
        %v1448 = vadd.f32 %v1395, %v1447
        %1449 = vdwg.mxu0
        %v1450 = vadd.f32 %v1432, %v511
        %v1451 = vadd.f32 %v1434, %v512
        %v1452 = vadd.f32 %v1436, %v513
        %v1453 = vadd.f32 %v1438, %v514
        %v1454 = vadd.f32 %v1442, %v515
        %v1455 = vadd.f32 %v1444, %v516
        %v1456 = vadd.f32 %v1446, %v517
        %v1457 = vadd.f32 %v1448, %v518
        %1458 = vst [vmem:[%s256] sm:$0xff] %v1450
        %1459 = vst [vmem:[%s256 + $0x8] sm:$0xff] %v1451
        %1460 = vst [vmem:[%s256 + $0x10] sm:$0xff] %v1452
        %1461 = vst [vmem:[%s256 + $0x18] sm:$0xff] %v1453
        %1462 = vst [vmem:[%s256 + $0x20] sm:$0xff] %v1454
        %1463 = vst [vmem:[%s256 + $0x28] sm:$0xff] %v1455
        %1464 = vst [vmem:[%s256 + $0x30] sm:$0xff] %v1456
        %1465 = vst [vmem:[%s256 + $0x38] sm:$0xff] %v1457
        %s1466 = sand.u32 %s154, 1
        %s1467 = scalar_lea.sflag [#allocation7], %s1466
        %s1468 = sand.u32 %s154, 1
        %s1469 = smul.addr %s1468, 64
        %s1470 = scalar_lea.vmem [#allocation8], %s1469
        // Predicated region
        $region49: #{tpu_custom_call.1} parent=39 // pred_check
          %p1471 = pneg %p164
        $region50: #{tpu_custom_call.1} parent=39 // pred_check_branch
          %1473 = sbr.rel (%p1471) target = $region52
        $region51: #{tpu_custom_call.1} parent=39 // pred_region
          %s1474 = smul.u32 2, %s27
          %s1476 = ssub.s32 1024, 1024
          %1477 = vsyncadd %s1467, %s1476
          %s1478 = smul.addr %s26, 8
          %s1479 = sadd.s32 %s1474, %s1478
          %s1480 = smul.addr %s1479, 128
          %s1481 = scalar_lea.hbm %s5, %s1480
          %s1482 = sshll.u32 %s1470, 4
          %s1483 = int_to_ptr.vmem [resolvable:$true] %s1482
          %1488 = dma.vmem_to_hbm [thread:$0]  %s1483, 1024, %s1481, %s1467, 256, 256, 16
        $region52: #{tpu_custom_call.1} parent=39 // pred_fallthru
          _
      $region40: #{tpu_custom_call.1} parent=5 // pred_fallthru
        _
      %p1489 = scmp.le.s32.totalorder 2, %s17
      // Predicated region
      $region53: #{tpu_custom_call.1} parent=5 // pred_check
        %p1490 = pneg %p1489
      $region54: #{tpu_custom_call.1} parent=5 // pred_check_branch
        %1492 = sbr.rel (%p1490) target = $region56
      $region55: #{tpu_custom_call.1} parent=5 // pred_region
        %s1493 = ssub.s32 %s17, 2
        // Predicated region
        $region57: #{tpu_custom_call.1} parent=55 // pred_check
          %p1494 = pneg %p170
        $region58: #{tpu_custom_call.1} parent=55 // pred_check_branch
          %1496 = sbr.rel (%p1494) target = $region60
        $region59: #{tpu_custom_call.1} parent=55 // pred_region
          %s1497 = sand.u32 %s155, 1
          %s1498 = scalar_lea.sflag [#allocation7], %s1497
          %s1499 = sand.u32 %s155, 1
          %s1500 = smul.addr %s1499, 64
          %s1501 = scalar_lea.vmem [#allocation8], %s1500
          %1502 = dma.done %s1498, 1024
        $region60: #{tpu_custom_call.1} parent=55 // pred_fallthru
          _
      $region56: #{tpu_custom_call.1} parent=5 // pred_fallthru
        _
    $region6: #{tpu_custom_call.1} parent=1 // loop_footer
      %s21 = sadd.s32 1, %s17
    $region7: #{tpu_custom_call.1} parent=1 // loop_footer_branch
      %16 = sbr.rel target = $region3
    $region8: #{tpu_custom_call.1} parent=1 // loop_exit
      _
    %1503 = vsyncpa [#allocation6], 1
    %s1504 = scalar_lea.sflag [#allocation6], 1
    %1505 = vsyncpa %s1504, 1
    %1506 = vsyncpa [#allocation7], 1
    %s1507 = scalar_lea.sflag [#allocation7], 1
    %1508 = vsyncpa %s1507, 1

</llo_original>
